<compile_context>
chip_gen: v7x
topology: tpu7x:2x2x1
jax: 0.10.0
libtpu: 0.0.40
codegen_flags: <defaults>
</compile_context>

<pallas_src>
import jax
import jax.numpy as jnp
import numpy as np
from jax import lax
from jax.experimental import pallas as pl
from jax.experimental.pallas import tpu as pltpu


def block_forward(x_nchw, params, *, kernel_size, stride, act="hswish", eps=1e-5):
    """Block.forward (inference mode). x_nchw: (N, Cin, H, W) f32 -> (N, Cout, Ho, Wo)."""
    N, Cin, H, W = x_nchw.shape
    K = kernel_size
    P = K // 2
    Cexp = params["w1"].shape[0]
    Cout = params["w3"].shape[0]
    Ho = (H + 2 * P - K) // stride + 1
    Wo = (W + 2 * P - K) // stride + 1

    has_short = (stride == 1)
    short_conv = has_short and (Cin != Cout)
    if short_conv:
        assert "wsc" in params and "bnsc" in params

    # ---- glue: NCHW -> (N, H*W, Cin) channels-last slab (lane axis = channels) ------
    x_flat = jnp.transpose(x_nchw, (0, 2, 3, 1)).reshape(N, H * W, Cin).astype(jnp.float32)

    # ---- fold eval-mode BatchNorms directly into the conv weights / biases ----------
    def fold(gamma, beta, mean, var):
        s = gamma / jnp.sqrt(var + eps)
        return s, beta - mean * s

    s1, b1 = fold(*params["bn1"])
    s2, b2 = fold(*params["bn2"])
    s3, b3 = fold(*params["bn3"])

    w1f = (params["w1"][:, :, 0, 0] * s1[:, None]).T.astype(jnp.float32)        # (Cin, Cexp)
    dwf = (params["w2"][:, 0, :, :] * s2[:, None, None])                         # (Cexp, K, K)
    dwf = jnp.transpose(dwf, (1, 2, 0)).reshape(K * K, Cexp).astype(jnp.float32)  # (K*K, Cexp)
    w3f = (params["w3"][:, :, 0, 0] * s3[:, None]).T.astype(jnp.float32)         # (Cexp, Cout)
    b1 = b1.reshape(1, Cexp).astype(jnp.float32)
    b2 = b2.reshape(1, Cexp).astype(jnp.float32)
    b3 = b3.reshape(1, Cout).astype(jnp.float32)

    args = [x_flat, w1f, b1, dwf, b2, w3f, b3]
    in_specs = [
        pl.BlockSpec((1, H * W, Cin), lambda n: (n, 0, 0)),
        pl.BlockSpec((Cin, Cexp), lambda n: (0, 0)),
        pl.BlockSpec((1, Cexp), lambda n: (0, 0)),
        pl.BlockSpec((K * K, Cexp), lambda n: (0, 0)),
        pl.BlockSpec((1, Cexp), lambda n: (0, 0)),
        pl.BlockSpec((Cexp, Cout), lambda n: (0, 0)),
        pl.BlockSpec((1, Cout), lambda n: (0, 0)),
    ]
    if short_conv:
        ssc, bsc = fold(*params["bnsc"])
        wscf = (params["wsc"][:, :, 0, 0] * ssc[:, None]).T.astype(jnp.float32)  # (Cin, Cout)
        bsc = bsc.reshape(1, Cout).astype(jnp.float32)
        args += [wscf, bsc]
        in_specs += [pl.BlockSpec((Cin, Cout), lambda n: (0, 0)),
                     pl.BlockSpec((1, Cout), lambda n: (0, 0))]

    def _act(v):
        if act == "relu":
            return jnp.maximum(v, 0.0)
        # hswish: x * relu6(x + 3) / 6
        return v * jnp.clip(v + 3.0, 0.0, 6.0) * (1.0 / 6.0)

    def kernel(*refs):
        if short_conv:
            (x_ref, w1_ref, b1_ref, dw_ref, b2_ref, w3_ref, b3_ref,
             wsc_ref, bsc_ref, o_ref, pad_ref) = refs
        else:
            (x_ref, w1_ref, b1_ref, dw_ref, b2_ref, w3_ref, b3_ref,
             o_ref, pad_ref) = refs

        x = x_ref[0]                                                  # (H*W, Cin)

        # -- 1x1 expand conv (BN folded) + activation: one MXU matmul ----------------
        y1 = jnp.dot(x, w1_ref[...], preferred_element_type=jnp.float32) + b1_ref[...]
        y1 = _act(y1)                                                 # (H*W, Cexp)

        # -- depthwise KxK conv (stride s, pad P, BN folded) + activation ------------
        # Zero-padded halo lives in a VMEM scratch; each tap is a shifted window times
        # a per-channel weight (VPU broadcast-FMA) -- no MXU work needed.
        pad_ref[...] = jnp.zeros_like(pad_ref)
        pad_ref[P:P + H, P:P + W, :] = y1.reshape(H, W, Cexp)
        dw = dw_ref[...]                                              # (K*K, Cexp)
        acc = jnp.zeros((Ho, Wo, Cexp), jnp.float32)
        for kh in range(K):
            for kw in range(K):
                if stride == 1:
                    win = pad_ref[kh:kh + Ho, kw:kw + Wo, :]
                else:
                    win = pad_ref[pl.ds(kh, Ho, stride), pl.ds(kw, Wo, stride), :]
                tap = dw[kh * K + kw:kh * K + kw + 1, :].reshape(1, 1, Cexp)
                acc = acc + win * tap
        y2 = _act(acc + b2_ref[...].reshape(1, 1, Cexp))
        y2 = y2.reshape(Ho * Wo, Cexp)

        # -- 1x1 project conv (BN folded): one MXU matmul ----------------------------
        y3 = jnp.dot(y2, w3_ref[...], preferred_element_type=jnp.float32) + b3_ref[...]

        # -- residual shortcut --------------------------------------------------------
        if has_short:
            if short_conv:
                y3 = y3 + (jnp.dot(x, wsc_ref[...],
                                   preferred_element_type=jnp.float32) + bsc_ref[...])
            else:
                y3 = y3 + x                                           # identity (Cin == Cout)

        o_ref[...] = y3.reshape(1, Ho * Wo, Cout).astype(o_ref.dtype)

    out = pl.pallas_call(
        kernel,
        out_shape=jax.ShapeDtypeStruct((N, Ho * Wo, Cout), jnp.float32),
        grid_spec=pltpu.PrefetchScalarGridSpec(
            num_scalar_prefetch=0,
            grid=(N,),
            in_specs=in_specs,
            out_specs=pl.BlockSpec((1, Ho * Wo, Cout), lambda n: (n, 0, 0)),
            scratch_shapes=[pltpu.VMEM((H + 2 * P, W + 2 * P, Cexp), jnp.float32)],
        ),
        compiler_params=pltpu.CompilerParams(
            dimension_semantics=("parallel",),          # batch across TensorCores on v7x
            vmem_limit_bytes=32 * 1024 * 1024,
        ),
    )(*args)

    # back to PyTorch NCHW (free metadata reshape on the contiguous slab + one transpose)
    return jnp.transpose(out.reshape(N, Ho, Wo, Cout), (0, 3, 1, 2))


def _reference_forward(x_nchw, params, *, kernel_size, stride, act="hswish", eps=1e-5):
    """Pure-JAX reference (same semantics) for a correctness cross-check."""
    K = kernel_size
    P = K // 2
    Cin = x_nchw.shape[1]
    Cexp = params["w1"].shape[0]
    Cout = params["w3"].shape[0]
    dn = ("NHWC", "HWIO", "NHWC")

    def bn(y, stats):
        gamma, beta, mean, var = stats
        s = gamma / jnp.sqrt(var + eps)
        return y * s + (beta - mean * s)

    def actf(v):
        if act == "relu":
            return jnp.maximum(v, 0.0)
        return v * jnp.clip(v + 3.0, 0.0, 6.0) / 6.0

    x = jnp.transpose(x_nchw, (0, 2, 3, 1))
    y = lax.conv_general_dilated(x, jnp.transpose(params["w1"], (2, 3, 1, 0)),
                                 (1, 1), "VALID", dimension_numbers=dn)
    y = actf(bn(y, params["bn1"]))
    y = lax.conv_general_dilated(y, jnp.transpose(params["w2"], (2, 3, 1, 0)),
                                 (stride, stride), ((P, P), (P, P)),
                                 dimension_numbers=dn, feature_group_count=Cexp)
    y = actf(bn(y, params["bn2"]))
    y = lax.conv_general_dilated(y, jnp.transpose(params["w3"], (2, 3, 1, 0)),
                                 (1, 1), "VALID", dimension_numbers=dn)
    y = bn(y, params["bn3"])
    if stride == 1:
        if Cin != Cout:
            sc = lax.conv_general_dilated(x, jnp.transpose(params["wsc"], (2, 3, 1, 0)),
                                          (1, 1), "VALID", dimension_numbers=dn)
            sc = bn(sc, params["bnsc"])
        else:
            sc = x
        y = y + sc
    return jnp.transpose(y, (0, 3, 1, 2))


if __name__ == "__main__":
    # Small instantiation: Block(kernel_size=3, in_channels=4, expand_size=16,
    # out_size=8, nolinear=hswish, semodule=None, stride=1).
    # stride=1 and in_channels != out_size -> the 1x1-conv + BN shortcut path is used.
    N, Cin, H, W = 2, 4, 16, 16
    Cexp, Cout, K, stride = 16, 8, 3, 1

    key = jax.random.PRNGKey(0)
    ks = list(jax.random.split(key, 24))

    def bn_stats(k0, k1, k2, k3, c):
        # BatchNorm evaluated in inference mode (running statistics), folded in-wrapper.
        return (1.0 + 0.1 * jax.random.normal(k0, (c,), jnp.float32),          # gamma
                0.1 * jax.random.normal(k1, (c,), jnp.float32),                # beta
                0.05 * jax.random.normal(k2, (c,), jnp.float32),               # running mean
                1.0 + 0.1 * jnp.abs(jax.random.normal(k3, (c,), jnp.float32)))  # running var

    x = jax.random.normal(ks[0], (N, Cin, H, W), dtype=jnp.float32)
    params = {
        "w1":   0.2 * jax.random.normal(ks[1], (Cexp, Cin, 1, 1), jnp.float32),
        "bn1":  bn_stats(ks[2], ks[3], ks[4], ks[5], Cexp),
        "w2":   0.2 * jax.random.normal(ks[6], (Cexp, 1, K, K), jnp.float32),
        "bn2":  bn_stats(ks[7], ks[8], ks[9], ks[10], Cexp),
        "w3":   0.2 * jax.random.normal(ks[11], (Cout, Cexp, 1, 1), jnp.float32),
        "bn3":  bn_stats(ks[12], ks[13], ks[14], ks[15], Cout),
        "wsc":  0.2 * jax.random.normal(ks[16], (Cout, Cin, 1, 1), jnp.float32),
        "bnsc": bn_stats(ks[17], ks[18], ks[19], ks[20], Cout),
    }

    out = block_forward(x, params, kernel_size=K, stride=stride, act="hswish")
    out = jax.block_until_ready(out)
    assert out.shape == (N, Cout, H, W)

    ref = _reference_forward(x, params, kernel_size=K, stride=stride, act="hswish")
    np.testing.assert_allclose(np.asarray(out), np.asarray(ref), rtol=1e-3, atol=1e-3)

    print("KERNEL_OK")
</pallas_src>

<mosaic_0001>
module attributes {stable_mosaic.version = 11 : i64} {
  func.func @kernel(%arg0: i32, %arg1: memref<1x256x4xf32, #tpu.memory_space<vmem>>, %arg2: memref<4x16xf32, #tpu.memory_space<vmem>>, %arg3: memref<1x16xf32, #tpu.memory_space<vmem>>, %arg4: memref<9x16xf32, #tpu.memory_space<vmem>>, %arg5: memref<1x16xf32, #tpu.memory_space<vmem>>, %arg6: memref<16x8xf32, #tpu.memory_space<vmem>>, %arg7: memref<1x8xf32, #tpu.memory_space<vmem>>, %arg8: memref<4x8xf32, #tpu.memory_space<vmem>>, %arg9: memref<1x8xf32, #tpu.memory_space<vmem>>, %arg10: memref<1x256x8xf32, #tpu.memory_space<vmem>>, %arg11: memref<18x18x16xf32, #tpu.memory_space<vmem>>) attributes {dimension_semantics = [#tpu.dimension_semantics<parallel>], iteration_bounds = array<i64: 2>, scalar_prefetch = 0 : i64, scratch_operands = 1 : i64, tpu.core_type = #tpu.core_type<tc>, window_params = [{transform_indices = @transform_0, window_bounds = array<i64: 1, 256, 4>}, {pipeline_mode = #tpu.pipeline_mode<synchronous>, transform_indices = @transform_1, window_bounds = array<i64: 4, 16>}, {pipeline_mode = #tpu.pipeline_mode<synchronous>, transform_indices = @transform_2, window_bounds = array<i64: 1, 16>}, {pipeline_mode = #tpu.pipeline_mode<synchronous>, transform_indices = @transform_3, window_bounds = array<i64: 9, 16>}, {pipeline_mode = #tpu.pipeline_mode<synchronous>, transform_indices = @transform_4, window_bounds = array<i64: 1, 16>}, {pipeline_mode = #tpu.pipeline_mode<synchronous>, transform_indices = @transform_5, window_bounds = array<i64: 16, 8>}, {pipeline_mode = #tpu.pipeline_mode<synchronous>, transform_indices = @transform_6, window_bounds = array<i64: 1, 8>}, {pipeline_mode = #tpu.pipeline_mode<synchronous>, transform_indices = @transform_7, window_bounds = array<i64: 4, 8>}, {pipeline_mode = #tpu.pipeline_mode<synchronous>, transform_indices = @transform_8, window_bounds = array<i64: 1, 8>}, {transform_indices = @transform_9, window_bounds = array<i64: 1, 256, 8>}]} {
    %c0 = arith.constant 0 : index
    %c0_0 = arith.constant 0 : index
    %c0_1 = arith.constant 0 : index
    %0 = vector.load %arg1[%c0, %c0_0, %c0_1] : memref<1x256x4xf32, #tpu.memory_space<vmem>>, vector<1x256x4xf32>
    %1 = vector.shape_cast %0 : vector<1x256x4xf32> to vector<256x4xf32>
    %c0_2 = arith.constant 0 : index
    %c0_3 = arith.constant 0 : index
    %2 = vector.load %arg2[%c0_2, %c0_3] : memref<4x16xf32, #tpu.memory_space<vmem>>, vector<4x16xf32>
    %cst = arith.constant dense<0.000000e+00> : vector<256x16xf32>
    %3 = tpu.matmul %1, %2, %cst {dimension_numbers = #tpu.dot_dimension_numbers<[1], [0], [0], [1], [0, 0, 1, 1], [], []>} : vector<256x4xf32>, vector<4x16xf32>, vector<256x16xf32> -> vector<256x16xf32>
    %c0_4 = arith.constant 0 : index
    %c0_5 = arith.constant 0 : index
    %4 = vector.load %arg3[%c0_4, %c0_5] : memref<1x16xf32, #tpu.memory_space<vmem>>, vector<1x16xf32>
    %5 = vector.broadcast %4 : vector<1x16xf32> to vector<256x16xf32>
    %6 = arith.addf %3, %5 : vector<256x16xf32>
    %cst_6 = arith.constant 3.000000e+00 : f32
    %7 = vector.broadcast %cst_6 : f32 to vector<256x16xf32>
    %8 = arith.addf %6, %7 : vector<256x16xf32>
    %cst_7 = arith.constant 0.000000e+00 : f32
    %cst_8 = arith.constant 6.000000e+00 : f32
    %9 = vector.broadcast %cst_7 : f32 to vector<256x16xf32>
    %10 = arith.maximumf %9, %8 : vector<256x16xf32>
    %11 = vector.broadcast %cst_8 : f32 to vector<256x16xf32>
    %12 = arith.minimumf %11, %10 : vector<256x16xf32>
    %13 = arith.mulf %6, %12 : vector<256x16xf32>
    %cst_9 = arith.constant 0.166666672 : f32
    %14 = vector.broadcast %cst_9 : f32 to vector<256x16xf32>
    %15 = arith.mulf %13, %14 : vector<256x16xf32>
    %cst_10 = arith.constant 0.000000e+00 : f32
    %16 = vector.broadcast %cst_10 : f32 to vector<18x18x16xf32>
    %c0_11 = arith.constant 0 : index
    %c0_12 = arith.constant 0 : index
    %c0_13 = arith.constant 0 : index
    %17 = vector.load %arg11[%c0_11, %c0_12, %c0_13] : memref<18x18x16xf32, #tpu.memory_space<vmem>>, vector<18x18x16xf32>
    tpu.vector_store %arg11[%c0_11, %c0_12, %c0_13], %16 {strides = array<i32>} : memref<18x18x16xf32, #tpu.memory_space<vmem>>, vector<18x18x16xf32>,
    %18 = vector.shape_cast %15 : vector<256x16xf32> to vector<16x16x16xf32>
    %c1 = arith.constant 1 : index
    %c1_14 = arith.constant 1 : index
    %c0_15 = arith.constant 0 : index
    %19 = vector.load %arg11[%c1, %c1_14, %c0_15] : memref<18x18x16xf32, #tpu.memory_space<vmem>>, vector<16x16x16xf32>
    tpu.vector_store %arg11[%c1, %c1_14, %c0_15], %18 {strides = array<i32>} : memref<18x18x16xf32, #tpu.memory_space<vmem>>, vector<16x16x16xf32>,
    %c0_16 = arith.constant 0 : index
    %c0_17 = arith.constant 0 : index
    %20 = vector.load %arg4[%c0_16, %c0_17] : memref<9x16xf32, #tpu.memory_space<vmem>>, vector<9x16xf32>
    %cst_18 = arith.constant 0.000000e+00 : f32
    %21 = vector.broadcast %cst_18 : f32 to vector<16x16x16xf32>
    %c0_19 = arith.constant 0 : index
    %c0_20 = arith.constant 0 : index
    %c0_21 = arith.constant 0 : index
    %22 = vector.load %arg11[%c0_19, %c0_20, %c0_21] : memref<18x18x16xf32, #tpu.memory_space<vmem>>, vector<16x16x16xf32>
    %23 = vector.extract_strided_slice %20 {offsets = [0, 0], sizes = [1, 16], strides = [1, 1]} : vector<9x16xf32> to vector<1x16xf32>
    %24 = vector.shape_cast %23 : vector<1x16xf32> to vector<1x1x16xf32>
    %25 = vector.broadcast %24 : vector<1x1x16xf32> to vector<16x16x16xf32>
    %26 = arith.mulf %22, %25 : vector<16x16x16xf32>
    %27 = arith.addf %21, %26 : vector<16x16x16xf32>
    %c0_22 = arith.constant 0 : index
    %c1_23 = arith.constant 1 : index
    %c0_24 = arith.constant 0 : index
    %28 = vector.load %arg11[%c0_22, %c1_23, %c0_24] : memref<18x18x16xf32, #tpu.memory_space<vmem>>, vector<16x16x16xf32>
    %29 = vector.extract_strided_slice %20 {offsets = [1, 0], sizes = [1, 16], strides = [1, 1]} : vector<9x16xf32> to vector<1x16xf32>
    %30 = vector.shape_cast %29 : vector<1x16xf32> to vector<1x1x16xf32>
    %31 = vector.broadcast %30 : vector<1x1x16xf32> to vector<16x16x16xf32>
    %32 = arith.mulf %28, %31 : vector<16x16x16xf32>
    %33 = arith.addf %27, %32 : vector<16x16x16xf32>
    %c0_25 = arith.constant 0 : index
    %c2 = arith.constant 2 : index
    %c0_26 = arith.constant 0 : index
    %34 = vector.load %arg11[%c0_25, %c2, %c0_26] : memref<18x18x16xf32, #tpu.memory_space<vmem>>, vector<16x16x16xf32>
    %35 = vector.extract_strided_slice %20 {offsets = [2, 0], sizes = [1, 16], strides = [1, 1]} : vector<9x16xf32> to vector<1x16xf32>
    %36 = vector.shape_cast %35 : vector<1x16xf32> to vector<1x1x16xf32>
    %37 = vector.broadcast %36 : vector<1x1x16xf32> to vector<16x16x16xf32>
    %38 = arith.mulf %34, %37 : vector<16x16x16xf32>
    %39 = arith.addf %33, %38 : vector<16x16x16xf32>
    %c1_27 = arith.constant 1 : index
    %c0_28 = arith.constant 0 : index
    %c0_29 = arith.constant 0 : index
    %40 = vector.load %arg11[%c1_27, %c0_28, %c0_29] : memref<18x18x16xf32, #tpu.memory_space<vmem>>, vector<16x16x16xf32>
    %41 = vector.extract_strided_slice %20 {offsets = [3, 0], sizes = [1, 16], strides = [1, 1]} : vector<9x16xf32> to vector<1x16xf32>
    %42 = vector.shape_cast %41 : vector<1x16xf32> to vector<1x1x16xf32>
    %43 = vector.broadcast %42 : vector<1x1x16xf32> to vector<16x16x16xf32>
    %44 = arith.mulf %40, %43 : vector<16x16x16xf32>
    %45 = arith.addf %39, %44 : vector<16x16x16xf32>
    %c1_30 = arith.constant 1 : index
    %c1_31 = arith.constant 1 : index
    %c0_32 = arith.constant 0 : index
    %46 = vector.load %arg11[%c1_30, %c1_31, %c0_32] : memref<18x18x16xf32, #tpu.memory_space<vmem>>, vector<16x16x16xf32>
    %47 = vector.extract_strided_slice %20 {offsets = [4, 0], sizes = [1, 16], strides = [1, 1]} : vector<9x16xf32> to vector<1x16xf32>
    %48 = vector.shape_cast %47 : vector<1x16xf32> to vector<1x1x16xf32>
    %49 = vector.broadcast %48 : vector<1x1x16xf32> to vector<16x16x16xf32>
    %50 = arith.mulf %46, %49 : vector<16x16x16xf32>
    %51 = arith.addf %45, %50 : vector<16x16x16xf32>
    %c1_33 = arith.constant 1 : index
    %c2_34 = arith.constant 2 : index
    %c0_35 = arith.constant 0 : index
    %52 = vector.load %arg11[%c1_33, %c2_34, %c0_35] : memref<18x18x16xf32, #tpu.memory_space<vmem>>, vector<16x16x16xf32>
    %53 = vector.extract_strided_slice %20 {offsets = [5, 0], sizes = [1, 16], strides = [1, 1]} : vector<9x16xf32> to vector<1x16xf32>
    %54 = vector.shape_cast %53 : vector<1x16xf32> to vector<1x1x16xf32>
    %55 = vector.broadcast %54 : vector<1x1x16xf32> to vector<16x16x16xf32>
    %56 = arith.mulf %52, %55 : vector<16x16x16xf32>
    %57 = arith.addf %51, %56 : vector<16x16x16xf32>
    %c2_36 = arith.constant 2 : index
    %c0_37 = arith.constant 0 : index
    %c0_38 = arith.constant 0 : index
    %58 = vector.load %arg11[%c2_36, %c0_37, %c0_38] : memref<18x18x16xf32, #tpu.memory_space<vmem>>, vector<16x16x16xf32>
    %59 = vector.extract_strided_slice %20 {offsets = [6, 0], sizes = [1, 16], strides = [1, 1]} : vector<9x16xf32> to vector<1x16xf32>
    %60 = vector.shape_cast %59 : vector<1x16xf32> to vector<1x1x16xf32>
    %61 = vector.broadcast %60 : vector<1x1x16xf32> to vector<16x16x16xf32>
    %62 = arith.mulf %58, %61 : vector<16x16x16xf32>
    %63 = arith.addf %57, %62 : vector<16x16x16xf32>
    %c2_39 = arith.constant 2 : index
    %c1_40 = arith.constant 1 : index
    %c0_41 = arith.constant 0 : index
    %64 = vector.load %arg11[%c2_39, %c1_40, %c0_41] : memref<18x18x16xf32, #tpu.memory_space<vmem>>, vector<16x16x16xf32>
    %65 = vector.extract_strided_slice %20 {offsets = [7, 0], sizes = [1, 16], strides = [1, 1]} : vector<9x16xf32> to vector<1x16xf32>
    %66 = vector.shape_cast %65 : vector<1x16xf32> to vector<1x1x16xf32>
    %67 = vector.broadcast %66 : vector<1x1x16xf32> to vector<16x16x16xf32>
    %68 = arith.mulf %64, %67 : vector<16x16x16xf32>
    %69 = arith.addf %63, %68 : vector<16x16x16xf32>
    %c2_42 = arith.constant 2 : index
    %c2_43 = arith.constant 2 : index
    %c0_44 = arith.constant 0 : index
    %70 = vector.load %arg11[%c2_42, %c2_43, %c0_44] : memref<18x18x16xf32, #tpu.memory_space<vmem>>, vector<16x16x16xf32>
    %71 = vector.extract_strided_slice %20 {offsets = [8, 0], sizes = [1, 16], strides = [1, 1]} : vector<9x16xf32> to vector<1x16xf32>
    %72 = vector.shape_cast %71 : vector<1x16xf32> to vector<1x1x16xf32>
    %73 = vector.broadcast %72 : vector<1x1x16xf32> to vector<16x16x16xf32>
    %74 = arith.mulf %70, %73 : vector<16x16x16xf32>
    %75 = arith.addf %69, %74 : vector<16x16x16xf32>
    %c0_45 = arith.constant 0 : index
    %c0_46 = arith.constant 0 : index
    %76 = vector.load %arg5[%c0_45, %c0_46] : memref<1x16xf32, #tpu.memory_space<vmem>>, vector<1x16xf32>
    %77 = vector.shape_cast %76 : vector<1x16xf32> to vector<1x1x16xf32>
    %78 = vector.broadcast %77 : vector<1x1x16xf32> to vector<16x16x16xf32>
    %79 = arith.addf %75, %78 : vector<16x16x16xf32>
    %cst_47 = arith.constant 3.000000e+00 : f32
    %80 = vector.broadcast %cst_47 : f32 to vector<16x16x16xf32>
    %81 = arith.addf %79, %80 : vector<16x16x16xf32>
    %cst_48 = arith.constant 0.000000e+00 : f32
    %cst_49 = arith.constant 6.000000e+00 : f32
    %82 = vector.broadcast %cst_48 : f32 to vector<16x16x16xf32>
    %83 = arith.maximumf %82, %81 : vector<16x16x16xf32>
    %84 = vector.broadcast %cst_49 : f32 to vector<16x16x16xf32>
    %85 = arith.minimumf %84, %83 : vector<16x16x16xf32>
    %86 = arith.mulf %79, %85 : vector<16x16x16xf32>
    %cst_50 = arith.constant 0.166666672 : f32
    %87 = vector.broadcast %cst_50 : f32 to vector<16x16x16xf32>
    %88 = arith.mulf %86, %87 : vector<16x16x16xf32>
    %89 = vector.shape_cast %88 : vector<16x16x16xf32> to vector<256x16xf32>
    %c0_51 = arith.constant 0 : index
    %c0_52 = arith.constant 0 : index
    %90 = vector.load %arg6[%c0_51, %c0_52] : memref<16x8xf32, #tpu.memory_space<vmem>>, vector<16x8xf32>
    %cst_53 = arith.constant dense<0.000000e+00> : vector<256x8xf32>
    %91 = tpu.matmul %89, %90, %cst_53 {dimension_numbers = #tpu.dot_dimension_numbers<[1], [0], [0], [1], [0, 0, 1, 1], [], []>} : vector<256x16xf32>, vector<16x8xf32>, vector<256x8xf32> -> vector<256x8xf32>
    %c0_54 = arith.constant 0 : index
    %c0_55 = arith.constant 0 : index
    %92 = vector.load %arg7[%c0_54, %c0_55] : memref<1x8xf32, #tpu.memory_space<vmem>>, vector<1x8xf32>
    %93 = vector.broadcast %92 : vector<1x8xf32> to vector<256x8xf32>
    %94 = arith.addf %91, %93 : vector<256x8xf32>
    %c0_56 = arith.constant 0 : index
    %c0_57 = arith.constant 0 : index
    %95 = vector.load %arg8[%c0_56, %c0_57] : memref<4x8xf32, #tpu.memory_space<vmem>>, vector<4x8xf32>
    %cst_58 = arith.constant dense<0.000000e+00> : vector<256x8xf32>
    %96 = tpu.matmul %1, %95, %cst_58 {dimension_numbers = #tpu.dot_dimension_numbers<[1], [0], [0], [1], [0, 0, 1, 1], [], []>} : vector<256x4xf32>, vector<4x8xf32>, vector<256x8xf32> -> vector<256x8xf32>
    %c0_59 = arith.constant 0 : index
    %c0_60 = arith.constant 0 : index
    %97 = vector.load %arg9[%c0_59, %c0_60] : memref<1x8xf32, #tpu.memory_space<vmem>>, vector<1x8xf32>
    %98 = vector.broadcast %97 : vector<1x8xf32> to vector<256x8xf32>
    %99 = arith.addf %96, %98 : vector<256x8xf32>
    %100 = arith.addf %94, %99 : vector<256x8xf32>
    %101 = vector.shape_cast %100 : vector<256x8xf32> to vector<1x256x8xf32>
    %c0_61 = arith.constant 0 : index
    %c0_62 = arith.constant 0 : index
    %c0_63 = arith.constant 0 : index
    %102 = vector.load %arg10[%c0_61, %c0_62, %c0_63] : memref<1x256x8xf32, #tpu.memory_space<vmem>>, vector<1x256x8xf32>
    tpu.vector_store %arg10[%c0_61, %c0_62, %c0_63], %101 {strides = array<i32>} : memref<1x256x8xf32, #tpu.memory_space<vmem>>, vector<1x256x8xf32>,
    return
  }
  func.func @transform_0(%arg0: i32) -> (i32, i32, i32) {
    %c0_i32 = arith.constant 0 : i32
    %c0_i32_0 = arith.constant 0 : i32
    %c0_i32_1 = arith.constant 0 : i32
    return %arg0, %c0_i32, %c0_i32_0 : i32, i32, i32
  }
  func.func @transform_1(%arg0: i32) -> (i32, i32) {
    %c0_i32 = arith.constant 0 : i32
    %c0_i32_0 = arith.constant 0 : i32
    %c0_i32_1 = arith.constant 0 : i32
    return %c0_i32, %c0_i32_0 : i32, i32
  }
  func.func @transform_2(%arg0: i32) -> (i32, i32) {
    %c0_i32 = arith.constant 0 : i32
    %c0_i32_0 = arith.constant 0 : i32
    %c0_i32_1 = arith.constant 0 : i32
    return %c0_i32, %c0_i32_0 : i32, i32
  }
  func.func @transform_3(%arg0: i32) -> (i32, i32) {
    %c0_i32 = arith.constant 0 : i32
    %c0_i32_0 = arith.constant 0 : i32
    %c0_i32_1 = arith.constant 0 : i32
    return %c0_i32, %c0_i32_0 : i32, i32
  }
  func.func @transform_4(%arg0: i32) -> (i32, i32) {
    %c0_i32 = arith.constant 0 : i32
    %c0_i32_0 = arith.constant 0 : i32
    %c0_i32_1 = arith.constant 0 : i32
    return %c0_i32, %c0_i32_0 : i32, i32
  }
  func.func @transform_5(%arg0: i32) -> (i32, i32) {
    %c0_i32 = arith.constant 0 : i32
    %c0_i32_0 = arith.constant 0 : i32
    %c0_i32_1 = arith.constant 0 : i32
    return %c0_i32, %c0_i32_0 : i32, i32
  }
  func.func @transform_6(%arg0: i32) -> (i32, i32) {
    %c0_i32 = arith.constant 0 : i32
    %c0_i32_0 = arith.constant 0 : i32
    %c0_i32_1 = arith.constant 0 : i32
    return %c0_i32, %c0_i32_0 : i32, i32
  }
  func.func @transform_7(%arg0: i32) -> (i32, i32) {
    %c0_i32 = arith.constant 0 : i32
    %c0_i32_0 = arith.constant 0 : i32
    %c0_i32_1 = arith.constant 0 : i32
    return %c0_i32, %c0_i32_0 : i32, i32
  }
  func.func @transform_8(%arg0: i32) -> (i32, i32) {
    %c0_i32 = arith.constant 0 : i32
    %c0_i32_0 = arith.constant 0 : i32
    %c0_i32_1 = arith.constant 0 : i32
    return %c0_i32, %c0_i32_0 : i32, i32
  }
  func.func @transform_9(%arg0: i32) -> (i32, i32, i32) {
    %c0_i32 = arith.constant 0 : i32
    %c0_i32_0 = arith.constant 0 : i32
    %c0_i32_1 = arith.constant 0 : i32
    return %arg0, %c0_i32, %c0_i32_0 : i32, i32, i32
  }
}

</mosaic_0001>

<llo_original>
// kernel: tpu_custom_call.1
$region0: #{tpu_custom_call.1}
  #allocation0 [shape = 'u32[]', space=smem, size = 0x4, offset = 0x4, fixed_abs, tag = 'smem constant byte address 0x4 - core index']
  #allocation1 [shape = 'u32[144,128]{1,0:T(1,128)}', space=vmem, size = 0x12000, scoped, tag = 'internal scratch']
  #allocation2 [shape = 'f32[18,18,16]{2,1,0:T(8,128)}', space=vmem, size = 0x36000, scoped, tag = 'scratch operand']
  %s0 = inlined_call_operand.vmem [shape: f32[2,256,4], index: 0, kind: input, shape index: {}]
  %s1 = inlined_call_operand.vmem [shape: f32[4,16], index: 1, kind: input, shape index: {}]
  %s2 = inlined_call_operand.vmem [shape: f32[1,16], index: 2, kind: input, shape index: {}]
  %s3 = inlined_call_operand.vmem [shape: f32[9,16], index: 3, kind: input, shape index: {}]
  %s4 = inlined_call_operand.vmem [shape: f32[1,16], index: 4, kind: input, shape index: {}]
  %s5 = inlined_call_operand.vmem [shape: f32[16,8], index: 5, kind: input, shape index: {}]
  %s6 = inlined_call_operand.vmem [shape: f32[1,8], index: 6, kind: input, shape index: {}]
  %s7 = inlined_call_operand.vmem [shape: f32[4,8], index: 7, kind: input, shape index: {}]
  %s8 = inlined_call_operand.vmem [shape: f32[1,8], index: 8, kind: input, shape index: {}]
  %s9 = inlined_call_operand.vmem [shape: f32[2,256,8], index: 9, kind: output, shape index: {}]
  %s10 = sld [smem:[#allocation0]]
  $region69: #{tpu_custom_call.1} parent=0
    _
  %s12 = ssub.s32 1, %s10
  %s13 = scalar_select 0, %s12, %s10
  loop: start=0, step=1, limit=4
  $region2: #{tpu_custom_call.1} parent=0 // loop_pre_header
    _
  $region3: #{tpu_custom_call.1} parent=0 // loop_header
    %s15 = sphi 0, %s19
    %p16 = scmp.ge.s32.totalorder %s15, 4
    %s25 = sphi 0, %s27
    %s28 = sphi 0, %s25
    %s29 = sphi 0, %s28
    %s45 = sphi 0, %s29
    %s49 = sphi 0, %s49
    %s51 = sphi 0, %s49
    %s52 = sphi 0, %s51
    %s66 = sphi 0, %s52
    %s70 = sphi 0, %s70
    %s72 = sphi 0, %s70
    %s73 = sphi 0, %s72
    %s87 = sphi 0, %s73
    %s91 = sphi 0, %s91
    %s93 = sphi 0, %s91
    %s94 = sphi 0, %s93
    %s108 = sphi 0, %s94
    %s112 = sphi 0, %s112
    %s114 = sphi 0, %s112
    %s115 = sphi 0, %s114
    %s129 = sphi 0, %s115
    %s133 = sphi 0, %s133
    %s135 = sphi 0, %s133
    %s136 = sphi 0, %s135
    %s150 = sphi 0, %s136
    %s154 = sphi 0, %s154
    %s156 = sphi 0, %s154
    %s157 = sphi 0, %s156
    %s171 = sphi 0, %s157
    %s175 = sphi 0, %s175
    %s177 = sphi 0, %s175
    %s178 = sphi 0, %s177
    %s192 = sphi 0, %s178
    %s196 = sphi 0, %s196
    %s198 = sphi 0, %s196
    %s199 = sphi 0, %s198
    %s213 = sphi 0, %s199
    %s219 = sphi 0, %s221
    %s222 = sphi 0, %s219
    %s223 = sphi 0, %s222
    %s239 = sphi 0, %s223
  $region4: #{tpu_custom_call.1} parent=0 // loop_header_branch
    %18 = sbr.rel (%p16) target = $region8
  $region5: #{tpu_custom_call.1} parent=0 // loop_body
    %s20 = ssub.s32 %s15, 1
    %s21 = ssub.s32 %s15, 2
    %s22 = sadd.s32 %s15, 1
    %s23 = ssub.s32 %s15, %s22
    %p24 = scmp.eq.s32.totalorder %s23, 0
    %s26 = sadd.s32 %s25, 1
    %s27 = scalar_select %p24, %s25, %s26
    %p30 = pneg %p24
    %p31 = scmp.eq.s32.totalorder %s15, 1
    %p32 = por %p30, %p31
    %p33 = scmp.ne.s32.totalorder %s25, %s28
    %p34 = scmp.eq.s32.totalorder %s15, 0
    %p35 = por %p33, %p34
    %p36 = scmp.ne.s32.totalorder %s25, %s28
    %p37 = scmp.eq.s32.totalorder %s20, 1
    %p38 = por %p36, %p37
    %p39 = scmp.ne.s32.totalorder %s28, %s29
    %p40 = scmp.eq.s32.totalorder %s20, 0
    %p41 = por %p39, %p40
    %p42 = scmp.ne.s32.totalorder %s28, %s29
    %p43 = scmp.eq.s32.totalorder %s21, 1
    %p44 = por %p42, %p43
    %p46 = scmp.ne.s32.totalorder %s29, %s45
    %p47 = scmp.eq.s32.totalorder %s21, 0
    %p48 = por %p46, %p47
    %s50 = sadd.s32 %s49, 1
    %p53 = scmp.eq.s32.totalorder %s15, 1
    %p54 = scmp.ne.s32.totalorder %s49, %s51
    %p55 = scmp.eq.s32.totalorder %s15, 0
    %p56 = por %p54, %p55
    %p57 = scmp.ne.s32.totalorder %s49, %s51
    %p58 = scmp.eq.s32.totalorder %s20, 1
    %p59 = por %p57, %p58
    %p60 = scmp.ne.s32.totalorder %s51, %s52
    %p61 = scmp.eq.s32.totalorder %s20, 0
    %p62 = por %p60, %p61
    %p63 = scmp.ne.s32.totalorder %s51, %s52
    %p64 = scmp.eq.s32.totalorder %s21, 1
    %p65 = por %p63, %p64
    %p67 = scmp.ne.s32.totalorder %s52, %s66
    %p68 = scmp.eq.s32.totalorder %s21, 0
    %p69 = por %p67, %p68
    %s71 = sadd.s32 %s70, 1
    %p74 = scmp.eq.s32.totalorder %s15, 1
    %p75 = scmp.ne.s32.totalorder %s70, %s72
    %p76 = scmp.eq.s32.totalorder %s15, 0
    %p77 = por %p75, %p76
    %p78 = scmp.ne.s32.totalorder %s70, %s72
    %p79 = scmp.eq.s32.totalorder %s20, 1
    %p80 = por %p78, %p79
    %p81 = scmp.ne.s32.totalorder %s72, %s73
    %p82 = scmp.eq.s32.totalorder %s20, 0
    %p83 = por %p81, %p82
    %p84 = scmp.ne.s32.totalorder %s72, %s73
    %p85 = scmp.eq.s32.totalorder %s21, 1
    %p86 = por %p84, %p85
    %p88 = scmp.ne.s32.totalorder %s73, %s87
    %p89 = scmp.eq.s32.totalorder %s21, 0
    %p90 = por %p88, %p89
    %s92 = sadd.s32 %s91, 1
    %p95 = scmp.eq.s32.totalorder %s15, 1
    %p96 = scmp.ne.s32.totalorder %s91, %s93
    %p97 = scmp.eq.s32.totalorder %s15, 0
    %p98 = por %p96, %p97
    %p99 = scmp.ne.s32.totalorder %s91, %s93
    %p100 = scmp.eq.s32.totalorder %s20, 1
    %p101 = por %p99, %p100
    %p102 = scmp.ne.s32.totalorder %s93, %s94
    %p103 = scmp.eq.s32.totalorder %s20, 0
    %p104 = por %p102, %p103
    %p105 = scmp.ne.s32.totalorder %s93, %s94
    %p106 = scmp.eq.s32.totalorder %s21, 1
    %p107 = por %p105, %p106
    %p109 = scmp.ne.s32.totalorder %s94, %s108
    %p110 = scmp.eq.s32.totalorder %s21, 0
    %p111 = por %p109, %p110
    %s113 = sadd.s32 %s112, 1
    %p116 = scmp.eq.s32.totalorder %s15, 1
    %p117 = scmp.ne.s32.totalorder %s112, %s114
    %p118 = scmp.eq.s32.totalorder %s15, 0
    %p119 = por %p117, %p118
    %p120 = scmp.ne.s32.totalorder %s112, %s114
    %p121 = scmp.eq.s32.totalorder %s20, 1
    %p122 = por %p120, %p121
    %p123 = scmp.ne.s32.totalorder %s114, %s115
    %p124 = scmp.eq.s32.totalorder %s20, 0
    %p125 = por %p123, %p124
    %p126 = scmp.ne.s32.totalorder %s114, %s115
    %p127 = scmp.eq.s32.totalorder %s21, 1
    %p128 = por %p126, %p127
    %p130 = scmp.ne.s32.totalorder %s115, %s129
    %p131 = scmp.eq.s32.totalorder %s21, 0
    %p132 = por %p130, %p131
    %s134 = sadd.s32 %s133, 1
    %p137 = scmp.eq.s32.totalorder %s15, 1
    %p138 = scmp.ne.s32.totalorder %s133, %s135
    %p139 = scmp.eq.s32.totalorder %s15, 0
    %p140 = por %p138, %p139
    %p141 = scmp.ne.s32.totalorder %s133, %s135
    %p142 = scmp.eq.s32.totalorder %s20, 1
    %p143 = por %p141, %p142
    %p144 = scmp.ne.s32.totalorder %s135, %s136
    %p145 = scmp.eq.s32.totalorder %s20, 0
    %p146 = por %p144, %p145
    %p147 = scmp.ne.s32.totalorder %s135, %s136
    %p148 = scmp.eq.s32.totalorder %s21, 1
    %p149 = por %p147, %p148
    %p151 = scmp.ne.s32.totalorder %s136, %s150
    %p152 = scmp.eq.s32.totalorder %s21, 0
    %p153 = por %p151, %p152
    %s155 = sadd.s32 %s154, 1
    %p158 = scmp.eq.s32.totalorder %s15, 1
    %p159 = scmp.ne.s32.totalorder %s154, %s156
    %p160 = scmp.eq.s32.totalorder %s15, 0
    %p161 = por %p159, %p160
    %p162 = scmp.ne.s32.totalorder %s154, %s156
    %p163 = scmp.eq.s32.totalorder %s20, 1
    %p164 = por %p162, %p163
    %p165 = scmp.ne.s32.totalorder %s156, %s157
    %p166 = scmp.eq.s32.totalorder %s20, 0
    %p167 = por %p165, %p166
    %p168 = scmp.ne.s32.totalorder %s156, %s157
    %p169 = scmp.eq.s32.totalorder %s21, 1
    %p170 = por %p168, %p169
    %p172 = scmp.ne.s32.totalorder %s157, %s171
    %p173 = scmp.eq.s32.totalorder %s21, 0
    %p174 = por %p172, %p173
    %s176 = sadd.s32 %s175, 1
    %p179 = scmp.eq.s32.totalorder %s15, 1
    %p180 = scmp.ne.s32.totalorder %s175, %s177
    %p181 = scmp.eq.s32.totalorder %s15, 0
    %p182 = por %p180, %p181
    %p183 = scmp.ne.s32.totalorder %s175, %s177
    %p184 = scmp.eq.s32.totalorder %s20, 1
    %p185 = por %p183, %p184
    %p186 = scmp.ne.s32.totalorder %s177, %s178
    %p187 = scmp.eq.s32.totalorder %s20, 0
    %p188 = por %p186, %p187
    %p189 = scmp.ne.s32.totalorder %s177, %s178
    %p190 = scmp.eq.s32.totalorder %s21, 1
    %p191 = por %p189, %p190
    %p193 = scmp.ne.s32.totalorder %s178, %s192
    %p194 = scmp.eq.s32.totalorder %s21, 0
    %p195 = por %p193, %p194
    %s197 = sadd.s32 %s196, 1
    %p200 = scmp.eq.s32.totalorder %s15, 1
    %p201 = scmp.ne.s32.totalorder %s196, %s198
    %p202 = scmp.eq.s32.totalorder %s15, 0
    %p203 = por %p201, %p202
    %p204 = scmp.ne.s32.totalorder %s196, %s198
    %p205 = scmp.eq.s32.totalorder %s20, 1
    %p206 = por %p204, %p205
    %p207 = scmp.ne.s32.totalorder %s198, %s199
    %p208 = scmp.eq.s32.totalorder %s20, 0
    %p209 = por %p207, %p208
    %p210 = scmp.ne.s32.totalorder %s198, %s199
    %p211 = scmp.eq.s32.totalorder %s21, 1
    %p212 = por %p210, %p211
    %p214 = scmp.ne.s32.totalorder %s199, %s213
    %p215 = scmp.eq.s32.totalorder %s21, 0
    %p216 = por %p214, %p215
    %s217 = ssub.s32 %s15, %s22
    %p218 = scmp.eq.s32.totalorder %s217, 0
    %s220 = sadd.s32 %s219, 1
    %s221 = scalar_select %p218, %s219, %s220
    %p224 = pneg %p218
    %p225 = scmp.eq.s32.totalorder %s15, 1
    %p226 = por %p224, %p225
    %p227 = scmp.ne.s32.totalorder %s219, %s222
    %p228 = scmp.eq.s32.totalorder %s15, 0
    %p229 = por %p227, %p228
    %p230 = scmp.ne.s32.totalorder %s219, %s222
    %p231 = scmp.eq.s32.totalorder %s20, 1
    %p232 = por %p230, %p231
    %p233 = scmp.ne.s32.totalorder %s222, %s223
    %p234 = scmp.eq.s32.totalorder %s20, 0
    %p235 = por %p233, %p234
    %p236 = scmp.ne.s32.totalorder %s222, %s223
    %p237 = scmp.eq.s32.totalorder %s21, 1
    %p238 = por %p236, %p237
    %p240 = scmp.ne.s32.totalorder %s223, %s239
    %p241 = scmp.eq.s32.totalorder %s21, 0
    %p242 = por %p240, %p241
    %p243 = scmp.le.s32.totalorder 1, %s15
    %p244 = scmp.lt.s32.totalorder %s15, 3
    %p245 = pnand %p243, %p244
    %p246 = pneg %p245
    // Predicated region
    $region9: #{tpu_custom_call.1} parent=5 // pred_check
      _
    $region10: #{tpu_custom_call.1} parent=5 // pred_check_branch
      %248 = sbr.rel (%p245) target = $region12
    $region11: #{tpu_custom_call.1} parent=5 // pred_region
      %s249 = ssub.s32 %s15, 1
      // Predicated region
      $region13: #{tpu_custom_call.1} parent=11 // pred_check
        %p250 = pneg %p62
      $region14: #{tpu_custom_call.1} parent=11 // pred_check_branch
        %252 = sbr.rel (%p250) target = $region16
      $region15: #{tpu_custom_call.1} parent=11 // pred_region
        _
      $region16: #{tpu_custom_call.1} parent=11 // pred_fallthru
        _
      // Predicated region
      $region17: #{tpu_custom_call.1} parent=11 // pred_check
        %p253 = pneg %p83
      $region18: #{tpu_custom_call.1} parent=11 // pred_check_branch
        %255 = sbr.rel (%p253) target = $region20
      $region19: #{tpu_custom_call.1} parent=11 // pred_region
        _
      $region20: #{tpu_custom_call.1} parent=11 // pred_fallthru
        _
      // Predicated region
      $region21: #{tpu_custom_call.1} parent=11 // pred_check
        %p256 = pneg %p104
      $region22: #{tpu_custom_call.1} parent=11 // pred_check_branch
        %258 = sbr.rel (%p256) target = $region24
      $region23: #{tpu_custom_call.1} parent=11 // pred_region
        _
      $region24: #{tpu_custom_call.1} parent=11 // pred_fallthru
        _
      // Predicated region
      $region25: #{tpu_custom_call.1} parent=11 // pred_check
        %p259 = pneg %p125
      $region26: #{tpu_custom_call.1} parent=11 // pred_check_branch
        %261 = sbr.rel (%p259) target = $region28
      $region27: #{tpu_custom_call.1} parent=11 // pred_region
        _
      $region28: #{tpu_custom_call.1} parent=11 // pred_fallthru
        _
      // Predicated region
      $region29: #{tpu_custom_call.1} parent=11 // pred_check
        %p262 = pneg %p146
      $region30: #{tpu_custom_call.1} parent=11 // pred_check_branch
        %264 = sbr.rel (%p262) target = $region32
      $region31: #{tpu_custom_call.1} parent=11 // pred_region
        _
      $region32: #{tpu_custom_call.1} parent=11 // pred_fallthru
        _
      // Predicated region
      $region33: #{tpu_custom_call.1} parent=11 // pred_check
        %p265 = pneg %p167
      $region34: #{tpu_custom_call.1} parent=11 // pred_check_branch
        %267 = sbr.rel (%p265) target = $region36
      $region35: #{tpu_custom_call.1} parent=11 // pred_region
        _
      $region36: #{tpu_custom_call.1} parent=11 // pred_fallthru
        _
      // Predicated region
      $region37: #{tpu_custom_call.1} parent=11 // pred_check
        %p268 = pneg %p188
      $region38: #{tpu_custom_call.1} parent=11 // pred_check_branch
        %270 = sbr.rel (%p268) target = $region40
      $region39: #{tpu_custom_call.1} parent=11 // pred_region
        _
      $region40: #{tpu_custom_call.1} parent=11 // pred_fallthru
        _
      // Predicated region
      $region41: #{tpu_custom_call.1} parent=11 // pred_check
        %p271 = pneg %p209
      $region42: #{tpu_custom_call.1} parent=11 // pred_check_branch
        %273 = sbr.rel (%p271) target = $region44
      $region43: #{tpu_custom_call.1} parent=11 // pred_region
        _
      $region44: #{tpu_custom_call.1} parent=11 // pred_fallthru
        _
    $region12: #{tpu_custom_call.1} parent=5 // pred_fallthru
      _
    %p274 = scmp.lt.s32.totalorder %s15, 2
    // Predicated region
    $region45: #{tpu_custom_call.1} parent=5 // pred_check
      %p275 = pneg %p274
    $region46: #{tpu_custom_call.1} parent=5 // pred_check_branch
      %277 = sbr.rel (%p275) target = $region48
    $region47: #{tpu_custom_call.1} parent=5 // pred_region
      // Predicated region
      $region49: #{tpu_custom_call.1} parent=47 // pred_check
        %p278 = pneg %p35
      $region50: #{tpu_custom_call.1} parent=47 // pred_check_branch
        %280 = sbr.rel (%p278) target = $region52
      $region51: #{tpu_custom_call.1} parent=47 // pred_region
        %p281 = scmp.lt.s32.totalorder %s15, 1
        %s282 = scalar_select %p281, %s15, 1
        %s283 = smul.addr %s282, 32
        %s284 = smul.addr %s283, 8
        %s285 = scalar_lea.vmem %s0, %s284
      $region52: #{tpu_custom_call.1} parent=47 // pred_fallthru
        _
    $region48: #{tpu_custom_call.1} parent=5 // pred_fallthru
      _
    %p286 = scmp.le.s32.totalorder 1, %s15
    %p287 = scmp.lt.s32.totalorder %s15, 3
    %p288 = pnand %p286, %p287
    %p289 = pneg %p288
    // Predicated region
    $region53: #{tpu_custom_call.1} parent=5 // pred_check
      _
    $region54: #{tpu_custom_call.1} parent=5 // pred_check_branch
      %291 = sbr.rel (%p288) target = $region56
    $region55: #{tpu_custom_call.1} parent=5 // pred_region
      %s292 = ssub.s32 %s15, 1
      %p293 = scmp.lt.s32.totalorder %s20, 1
      %s294 = scalar_select %p293, %s20, 1
      %s295 = smul.addr %s294, 32
      %s296 = smul.addr %s295, 8
      %s297 = scalar_lea.vmem %s0, %s296
      %p298 = pneg %p41
      %p299 = pneg %p38
      %p300 = pneg %p62
      %p301 = pneg %p59
      %p302 = pneg %p83
      %p303 = pneg %p80
      %p304 = pneg %p104
      %p305 = pneg %p101
      %p306 = pneg %p125
      %p307 = pneg %p122
      %p308 = pneg %p146
      %p309 = pneg %p143
      %p310 = pneg %p167
      %p311 = pneg %p164
      %p312 = pneg %p188
      %p313 = pneg %p185
      %p314 = pneg %p209
      %p315 = pneg %p206
      %p316 = pneg %p235
      %p317 = pneg %p232
      %p318 = scmp.lt.s32.totalorder %s20, 1
      %s319 = scalar_select %p318, %s20, 1
      %s320 = smul.addr %s319, 32
      %s321 = smul.addr %s320, 8
      %s322 = scalar_lea.vmem %s9, %s321
      %p323 = scmp.lt.s32.totalorder %s20, 1
      %s324 = scalar_select %p323, %s20, 1
      %s325 = smul.addr %s324, 32
      %s326 = smul.addr %s325, 8
      %s327 = scalar_lea.vmem %s0, %s326
      %p328 = scmp.lt.s32.totalorder %s20, 1
      %s329 = scalar_select %p328, %s20, 1
      %s330 = smul.addr %s329, 32
      %s331 = smul.addr %s330, 8
      %s332 = scalar_lea.vmem %s9, %s331
      %v333 = vld [vmem:[%s327] sm:$0xff]
      %v334 = vld [vmem:[%s327 + $0x8] sm:$0xff]
      %v335 = vld [vmem:[%s327 + $0x10] sm:$0xff]
      %v336 = vld [vmem:[%s327 + $0x18] sm:$0xff]
      %v337 = vld [vmem:[%s327 + $0x20] sm:$0xff]
      %v338 = vld [vmem:[%s327 + $0x28] sm:$0xff]
      %v339 = vld [vmem:[%s327 + $0x30] sm:$0xff]
      %v340 = vld [vmem:[%s327 + $0x38] sm:$0xff]
      %v341 = vld [vmem:[%s327 + $0x40] sm:$0xff]
      %v342 = vld [vmem:[%s327 + $0x48] sm:$0xff]
      %v343 = vld [vmem:[%s327 + $0x50] sm:$0xff]
      %v344 = vld [vmem:[%s327 + $0x58] sm:$0xff]
      %v345 = vld [vmem:[%s327 + $0x60] sm:$0xff]
      %v346 = vld [vmem:[%s327 + $0x68] sm:$0xff]
      %v347 = vld [vmem:[%s327 + $0x70] sm:$0xff]
      %v348 = vld [vmem:[%s327 + $0x78] sm:$0xff]
      %v349 = vld [vmem:[%s327 + $0x80] sm:$0xff]
      %v350 = vld [vmem:[%s327 + $0x88] sm:$0xff]
      %v351 = vld [vmem:[%s327 + $0x90] sm:$0xff]
      %v352 = vld [vmem:[%s327 + $0x98] sm:$0xff]
      %v353 = vld [vmem:[%s327 + $0xa0] sm:$0xff]
      %v354 = vld [vmem:[%s327 + $0xa8] sm:$0xff]
      %v355 = vld [vmem:[%s327 + $0xb0] sm:$0xff]
      %v356 = vld [vmem:[%s327 + $0xb8] sm:$0xff]
      %v357 = vld [vmem:[%s327 + $0xc0] sm:$0xff]
      %v358 = vld [vmem:[%s327 + $0xc8] sm:$0xff]
      %v359 = vld [vmem:[%s327 + $0xd0] sm:$0xff]
      %v360 = vld [vmem:[%s327 + $0xd8] sm:$0xff]
      %v361 = vld [vmem:[%s327 + $0xe0] sm:$0xff]
      %v362 = vld [vmem:[%s327 + $0xe8] sm:$0xff]
      %v363 = vld [vmem:[%s327 + $0xf0] sm:$0xff]
      %v364 = vld [vmem:[%s327 + $0xf8] sm:$0xff]
      %v365 = vld [vmem:[%s1] sm:$0xf]
      %v366 = vld [vmem:[%s2] sm:$0x1]
      %v368 = vlaneseq
      %v369 = vshrl.u32 %v368, 7
      %v370 = vsub.s32 0, %v369
      %v371 = vrot.slane %v366, %v370
      %vm373 = vcmask 31744
      %v375 = vsel %vm373, %v333, 0
      %v378 = vsel %vm373, %v334, 0
      %v381 = vsel %vm373, %v335, 0
      %v384 = vsel %vm373, %v336, 0
      %v387 = vsel %vm373, %v337, 0
      %v390 = vsel %vm373, %v338, 0
      %v393 = vsel %vm373, %v339, 0
      %v396 = vsel %vm373, %v340, 0
      %v399 = vsel %vm373, %v341, 0
      %v402 = vsel %vm373, %v342, 0
      %v405 = vsel %vm373, %v343, 0
      %v408 = vsel %vm373, %v344, 0
      %v411 = vsel %vm373, %v345, 0
      %v414 = vsel %vm373, %v346, 0
      %v417 = vsel %vm373, %v347, 0
      %v420 = vsel %vm373, %v348, 0
      %v423 = vsel %vm373, %v349, 0
      %v426 = vsel %vm373, %v350, 0
      %v429 = vsel %vm373, %v351, 0
      %v432 = vsel %vm373, %v352, 0
      %v435 = vsel %vm373, %v353, 0
      %v438 = vsel %vm373, %v354, 0
      %v441 = vsel %vm373, %v355, 0
      %v444 = vsel %vm373, %v356, 0
      %v447 = vsel %vm373, %v357, 0
      %v450 = vsel %vm373, %v358, 0
      %v453 = vsel %vm373, %v359, 0
      %v456 = vsel %vm373, %v360, 0
      %v459 = vsel %vm373, %v361, 0
      %v462 = vsel %vm373, %v362, 0
      %v465 = vsel %vm373, %v363, 0
      %v468 = vsel %vm373, %v364, 0
      %vm470 = vcmask 1043456
      %v472 = vsel %vm470, %v365, 0
      %474 = vmatprep.subr.mxu0 0.0
      %475 = vmatpush1.msra.mxu0 %v472
      %476 = vmatprep.subr.mxu0 0.0
      %477 = vmatpush1.msra.mxu0 0.0
      %478 = vmatprep.subr.mxu0 0.0
      %479 = vmatpush1.msra.mxu0 0.0
      %480 = vmatprep.subr.mxu0 0.0
      %481 = vmatpush1.msra.mxu0 0.0
      %482 = vmatprep.subr.mxu0 0.0
      %483 = vmatpush1.msra.mxu0 0.0
      %484 = vmatprep.subr.mxu0 0.0
      %485 = vmatpush1.msra.mxu0 0.0
      %486 = vmatprep.subr.mxu0 0.0
      %487 = vmatpush1.msra.mxu0 0.0
      %488 = vmatprep.subr.mxu0 0.0
      %489 = vmatpush1.msra.mxu0 0.0
      %490 = vmatprep.subr.mxu0 0.0
      %491 = vmatpush1.msra.mxu0 0.0
      %492 = vmatprep.subr.mxu0 0.0
      %493 = vmatpush1.msra.mxu0 0.0
      %494 = vmatprep.subr.mxu0 0.0
      %495 = vmatpush1.msra.mxu0 0.0
      %496 = vmatprep.subr.mxu0 0.0
      %497 = vmatpush1.msra.mxu0 0.0
      %498 = vmatprep.subr.mxu0 0.0
      %499 = vmatpush1.msra.mxu0 0.0
      %500 = vmatprep.subr.mxu0 0.0
      %501 = vmatpush1.msra.mxu0 0.0
      %502 = vmatprep.subr.mxu0 0.0
      %503 = vmatpush1.msra.mxu0 0.0
      %504 = vmatprep.subr.mxu0 0.0
      %505 = vmatpush1.msra.mxu0 0.0
      %506 = vmatprep.subr.mxu0 0.0
      %507 = vmatpush1.msra.mxu0 0.0
      %508 = vmatprep.subr.mxu0 0.0
      %509 = vmatpush1.msra.mxu0 0.0
      %510 = vmatprep.subr.mxu0 0.0
      %511 = vmatpush1.msra.mxu0 0.0
      %512 = vmatprep.subr.mxu0 0.0
      %513 = vmatpush1.msra.mxu0 0.0
      %514 = vmatprep.subr.mxu0 0.0
      %515 = vmatpush1.msra.mxu0 0.0
      %516 = vmatprep.subr.mxu0 0.0
      %517 = vmatpush1.msra.mxu0 0.0
      %518 = vmatprep.subr.mxu0 0.0
      %519 = vmatpush1.msra.mxu0 0.0
      %520 = vmatprep.subr.mxu0 0.0
      %521 = vmatpush1.msra.mxu0 0.0
      %522 = vmatprep.subr.mxu0 0.0
      %523 = vmatpush1.msra.mxu0 0.0
      %524 = vmatprep.subr.mxu0 0.0
      %525 = vmatpush1.msra.mxu0 0.0
      %526 = vmatprep.subr.mxu0 0.0
      %527 = vmatpush1.msra.mxu0 0.0
      %528 = vmatprep.subr.mxu0 0.0
      %529 = vmatpush1.msra.mxu0 0.0
      %530 = vmatprep.subr.mxu0 0.0
      %531 = vmatpush1.msra.mxu0 0.0
      %532 = vmatprep.subr.mxu0 0.0
      %533 = vmatpush1.msra.mxu0 0.0
      %534 = vmatprep.subr.mxu0 0.0
      %535 = vmatpush1.msra.mxu0 0.0
      %536 = vmatprep.subr.mxu0 0.0
      %537 = vmatpush1.msra.mxu0 0.0
      %538 = vmatprep.mubr.f32.mxu0 0.0
      %539 = vmatmul.mubr.f32.gmra.mrb[0].mxu0 %v375
      %v540 = vpop.f32.mrb[0].mxu0
      %v541 = vadd.f32 %v371, %v540
      %v542 = vpop.f32.mrb[0].mxu0
      %543 = vmatprep.mubr.f32.mxu0 0.0
      %544 = vmatmul.mubr.f32.gmra.mrb[0].mxu0 %v378
      %v545 = vpop.f32.mrb[0].mxu0
      %v546 = vadd.f32 %v371, %v545
      %v547 = vpop.f32.mrb[0].mxu0
      %548 = vmatprep.mubr.f32.mxu0 0.0
      %549 = vmatmul.mubr.f32.gmra.mrb[0].mxu0 %v381
      %v550 = vpop.f32.mrb[0].mxu0
      %v551 = vadd.f32 %v371, %v550
      %v552 = vpop.f32.mrb[0].mxu0
      %553 = vmatprep.mubr.f32.mxu0 0.0
      %554 = vmatmul.mubr.f32.gmra.mrb[0].mxu0 %v384
      %v555 = vpop.f32.mrb[0].mxu0
      %v556 = vadd.f32 %v371, %v555
      %v557 = vpop.f32.mrb[0].mxu0
      %558 = vmatprep.mubr.f32.mxu0 0.0
      %559 = vmatmul.mubr.f32.gmra.mrb[0].mxu0 %v387
      %v560 = vpop.f32.mrb[0].mxu0
      %v561 = vadd.f32 %v371, %v560
      %v562 = vpop.f32.mrb[0].mxu0
      %563 = vmatprep.mubr.f32.mxu0 0.0
      %564 = vmatmul.mubr.f32.gmra.mrb[0].mxu0 %v390
      %v565 = vpop.f32.mrb[0].mxu0
      %v566 = vadd.f32 %v371, %v565
      %v567 = vpop.f32.mrb[0].mxu0
      %568 = vmatprep.mubr.f32.mxu0 0.0
      %569 = vmatmul.mubr.f32.gmra.mrb[0].mxu0 %v393
      %v570 = vpop.f32.mrb[0].mxu0
      %v571 = vadd.f32 %v371, %v570
      %v572 = vpop.f32.mrb[0].mxu0
      %573 = vmatprep.mubr.f32.mxu0 0.0
      %574 = vmatmul.mubr.f32.gmra.mrb[0].mxu0 %v396
      %v575 = vpop.f32.mrb[0].mxu0
      %v576 = vadd.f32 %v371, %v575
      %v577 = vpop.f32.mrb[0].mxu0
      %578 = vmatprep.mubr.f32.mxu0 0.0
      %579 = vmatmul.mubr.f32.gmra.mrb[0].mxu0 %v399
      %v580 = vpop.f32.mrb[0].mxu0
      %v581 = vadd.f32 %v371, %v580
      %v582 = vpop.f32.mrb[0].mxu0
      %583 = vmatprep.mubr.f32.mxu0 0.0
      %584 = vmatmul.mubr.f32.gmra.mrb[0].mxu0 %v402
      %v585 = vpop.f32.mrb[0].mxu0
      %v586 = vadd.f32 %v371, %v585
      %v587 = vpop.f32.mrb[0].mxu0
      %588 = vmatprep.mubr.f32.mxu0 0.0
      %589 = vmatmul.mubr.f32.gmra.mrb[0].mxu0 %v405
      %v590 = vpop.f32.mrb[0].mxu0
      %v591 = vadd.f32 %v371, %v590
      %v592 = vpop.f32.mrb[0].mxu0
      %593 = vmatprep.mubr.f32.mxu0 0.0
      %594 = vmatmul.mubr.f32.gmra.mrb[0].mxu0 %v408
      %v595 = vpop.f32.mrb[0].mxu0
      %v596 = vadd.f32 %v371, %v595
      %v597 = vpop.f32.mrb[0].mxu0
      %598 = vmatprep.mubr.f32.mxu0 0.0
      %599 = vmatmul.mubr.f32.gmra.mrb[0].mxu0 %v411
      %v600 = vpop.f32.mrb[0].mxu0
      %v601 = vadd.f32 %v371, %v600
      %v602 = vpop.f32.mrb[0].mxu0
      %603 = vmatprep.mubr.f32.mxu0 0.0
      %604 = vmatmul.mubr.f32.gmra.mrb[0].mxu0 %v414
      %v605 = vpop.f32.mrb[0].mxu0
      %v606 = vadd.f32 %v371, %v605
      %v607 = vpop.f32.mrb[0].mxu0
      %608 = vmatprep.mubr.f32.mxu0 0.0
      %609 = vmatmul.mubr.f32.gmra.mrb[0].mxu0 %v417
      %v610 = vpop.f32.mrb[0].mxu0
      %v611 = vadd.f32 %v371, %v610
      %v612 = vpop.f32.mrb[0].mxu0
      %613 = vmatprep.mubr.f32.mxu0 0.0
      %614 = vmatmul.mubr.f32.gmra.mrb[0].mxu0 %v420
      %v615 = vpop.f32.mrb[0].mxu0
      %v616 = vadd.f32 %v371, %v615
      %v617 = vpop.f32.mrb[0].mxu0
      %618 = vmatprep.mubr.f32.mxu0 0.0
      %619 = vmatmul.mubr.f32.gmra.mrb[0].mxu0 %v423
      %v620 = vpop.f32.mrb[0].mxu0
      %v621 = vadd.f32 %v371, %v620
      %v622 = vpop.f32.mrb[0].mxu0
      %623 = vmatprep.mubr.f32.mxu0 0.0
      %624 = vmatmul.mubr.f32.gmra.mrb[0].mxu0 %v426
      %v625 = vpop.f32.mrb[0].mxu0
      %v626 = vadd.f32 %v371, %v625
      %v627 = vpop.f32.mrb[0].mxu0
      %628 = vmatprep.mubr.f32.mxu0 0.0
      %629 = vmatmul.mubr.f32.gmra.mrb[0].mxu0 %v429
      %v630 = vpop.f32.mrb[0].mxu0
      %v631 = vadd.f32 %v371, %v630
      %v632 = vpop.f32.mrb[0].mxu0
      %633 = vmatprep.mubr.f32.mxu0 0.0
      %634 = vmatmul.mubr.f32.gmra.mrb[0].mxu0 %v432
      %v635 = vpop.f32.mrb[0].mxu0
      %v636 = vadd.f32 %v371, %v635
      %v637 = vpop.f32.mrb[0].mxu0
      %638 = vmatprep.mubr.f32.mxu0 0.0
      %639 = vmatmul.mubr.f32.gmra.mrb[0].mxu0 %v435
      %v640 = vpop.f32.mrb[0].mxu0
      %v641 = vadd.f32 %v371, %v640
      %v642 = vpop.f32.mrb[0].mxu0
      %643 = vmatprep.mubr.f32.mxu0 0.0
      %644 = vmatmul.mubr.f32.gmra.mrb[0].mxu0 %v438
      %v645 = vpop.f32.mrb[0].mxu0
      %v646 = vadd.f32 %v371, %v645
      %v647 = vpop.f32.mrb[0].mxu0
      %648 = vmatprep.mubr.f32.mxu0 0.0
      %649 = vmatmul.mubr.f32.gmra.mrb[0].mxu0 %v441
      %v650 = vpop.f32.mrb[0].mxu0
      %v651 = vadd.f32 %v371, %v650
      %v652 = vpop.f32.mrb[0].mxu0
      %653 = vmatprep.mubr.f32.mxu0 0.0
      %654 = vmatmul.mubr.f32.gmra.mrb[0].mxu0 %v444
      %v655 = vpop.f32.mrb[0].mxu0
      %v656 = vadd.f32 %v371, %v655
      %v657 = vpop.f32.mrb[0].mxu0
      %658 = vmatprep.mubr.f32.mxu0 0.0
      %659 = vmatmul.mubr.f32.gmra.mrb[0].mxu0 %v447
      %v660 = vpop.f32.mrb[0].mxu0
      %v661 = vadd.f32 %v371, %v660
      %v662 = vpop.f32.mrb[0].mxu0
      %663 = vmatprep.mubr.f32.mxu0 0.0
      %664 = vmatmul.mubr.f32.gmra.mrb[0].mxu0 %v450
      %v665 = vpop.f32.mrb[0].mxu0
      %v666 = vadd.f32 %v371, %v665
      %v667 = vpop.f32.mrb[0].mxu0
      %668 = vmatprep.mubr.f32.mxu0 0.0
      %669 = vmatmul.mubr.f32.gmra.mrb[0].mxu0 %v453
      %v670 = vpop.f32.mrb[0].mxu0
      %v671 = vadd.f32 %v371, %v670
      %v672 = vpop.f32.mrb[0].mxu0
      %673 = vmatprep.mubr.f32.mxu0 0.0
      %674 = vmatmul.mubr.f32.gmra.mrb[0].mxu0 %v456
      %v675 = vpop.f32.mrb[0].mxu0
      %v676 = vadd.f32 %v371, %v675
      %v677 = vpop.f32.mrb[0].mxu0
      %678 = vmatprep.mubr.f32.mxu0 0.0
      %679 = vmatmul.mubr.f32.gmra.mrb[0].mxu0 %v459
      %v680 = vpop.f32.mrb[0].mxu0
      %v681 = vadd.f32 %v371, %v680
      %v682 = vpop.f32.mrb[0].mxu0
      %683 = vmatprep.mubr.f32.mxu0 0.0
      %684 = vmatmul.mubr.f32.gmra.mrb[0].mxu0 %v462
      %v685 = vpop.f32.mrb[0].mxu0
      %v686 = vadd.f32 %v371, %v685
      %v687 = vpop.f32.mrb[0].mxu0
      %688 = vmatprep.mubr.f32.mxu0 0.0
      %689 = vmatmul.mubr.f32.gmra.mrb[0].mxu0 %v465
      %v690 = vpop.f32.mrb[0].mxu0
      %v691 = vadd.f32 %v371, %v690
      %v692 = vpop.f32.mrb[0].mxu0
      %693 = vmatprep.mubr.f32.mxu0 0.0
      %694 = vmatmul.mubr.f32.gmra.mrb[0].mxu0 %v468
      %v695 = vpop.f32.mrb[0].mxu0
      %v696 = vadd.f32 %v371, %v695
      %v697 = vpop.f32.mrb[0].mxu0
      %698 = vdwg.mxu0
      %v699 = vadd.f32 %v541, 3.0
      %v700 = vadd.f32 %v546, 3.0
      %v701 = vadd.f32 %v551, 3.0
      %v702 = vadd.f32 %v556, 3.0
      %v703 = vadd.f32 %v561, 3.0
      %v704 = vadd.f32 %v566, 3.0
      %v705 = vadd.f32 %v571, 3.0
      %v706 = vadd.f32 %v576, 3.0
      %v707 = vadd.f32 %v581, 3.0
      %v708 = vadd.f32 %v586, 3.0
      %v709 = vadd.f32 %v591, 3.0
      %v710 = vadd.f32 %v596, 3.0
      %v711 = vadd.f32 %v601, 3.0
      %v712 = vadd.f32 %v606, 3.0
      %v713 = vadd.f32 %v611, 3.0
      %v714 = vadd.f32 %v616, 3.0
      %v715 = vadd.f32 %v621, 3.0
      %v716 = vadd.f32 %v626, 3.0
      %v717 = vadd.f32 %v631, 3.0
      %v718 = vadd.f32 %v636, 3.0
      %v719 = vadd.f32 %v641, 3.0
      %v720 = vadd.f32 %v646, 3.0
      %v721 = vadd.f32 %v651, 3.0
      %v722 = vadd.f32 %v656, 3.0
      %v723 = vadd.f32 %v661, 3.0
      %v724 = vadd.f32 %v666, 3.0
      %v725 = vadd.f32 %v671, 3.0
      %v726 = vadd.f32 %v676, 3.0
      %v727 = vadd.f32 %v681, 3.0
      %v728 = vadd.f32 %v686, 3.0
      %v729 = vadd.f32 %v691, 3.0
      %v730 = vadd.f32 %v696, 3.0
      %v731 = vmax.f32 %v699, 0.0
      %v732 = vmax.f32 %v700, 0.0
      %v733 = vmax.f32 %v701, 0.0
      %v734 = vmax.f32 %v702, 0.0
      %v735 = vmax.f32 %v703, 0.0
      %v736 = vmax.f32 %v704, 0.0
      %v737 = vmax.f32 %v705, 0.0
      %v738 = vmax.f32 %v706, 0.0
      %v739 = vmax.f32 %v707, 0.0
      %v740 = vmax.f32 %v708, 0.0
      %v741 = vmax.f32 %v709, 0.0
      %v742 = vmax.f32 %v710, 0.0
      %v743 = vmax.f32 %v711, 0.0
      %v744 = vmax.f32 %v712, 0.0
      %v745 = vmax.f32 %v713, 0.0
      %v746 = vmax.f32 %v714, 0.0
      %v747 = vmax.f32 %v715, 0.0
      %v748 = vmax.f32 %v716, 0.0
      %v749 = vmax.f32 %v717, 0.0
      %v750 = vmax.f32 %v718, 0.0
      %v751 = vmax.f32 %v719, 0.0
      %v752 = vmax.f32 %v720, 0.0
      %v753 = vmax.f32 %v721, 0.0
      %v754 = vmax.f32 %v722, 0.0
      %v755 = vmax.f32 %v723, 0.0
      %v756 = vmax.f32 %v724, 0.0
      %v757 = vmax.f32 %v725, 0.0
      %v758 = vmax.f32 %v726, 0.0
      %v759 = vmax.f32 %v727, 0.0
      %v760 = vmax.f32 %v728, 0.0
      %v761 = vmax.f32 %v729, 0.0
      %v762 = vmax.f32 %v730, 0.0
      %v763 = vmin.f32 %v731, 6.0
      %v764 = vmin.f32 %v732, 6.0
      %v765 = vmin.f32 %v733, 6.0
      %v766 = vmin.f32 %v734, 6.0
      %v767 = vmin.f32 %v735, 6.0
      %v768 = vmin.f32 %v736, 6.0
      %v769 = vmin.f32 %v737, 6.0
      %v770 = vmin.f32 %v738, 6.0
      %v771 = vmin.f32 %v739, 6.0
      %v772 = vmin.f32 %v740, 6.0
      %v773 = vmin.f32 %v741, 6.0
      %v774 = vmin.f32 %v742, 6.0
      %v775 = vmin.f32 %v743, 6.0
      %v776 = vmin.f32 %v744, 6.0
      %v777 = vmin.f32 %v745, 6.0
      %v778 = vmin.f32 %v746, 6.0
      %v779 = vmin.f32 %v747, 6.0
      %v780 = vmin.f32 %v748, 6.0
      %v781 = vmin.f32 %v749, 6.0
      %v782 = vmin.f32 %v750, 6.0
      %v783 = vmin.f32 %v751, 6.0
      %v784 = vmin.f32 %v752, 6.0
      %v785 = vmin.f32 %v753, 6.0
      %v786 = vmin.f32 %v754, 6.0
      %v787 = vmin.f32 %v755, 6.0
      %v788 = vmin.f32 %v756, 6.0
      %v789 = vmin.f32 %v757, 6.0
      %v790 = vmin.f32 %v758, 6.0
      %v791 = vmin.f32 %v759, 6.0
      %v792 = vmin.f32 %v760, 6.0
      %v793 = vmin.f32 %v761, 6.0
      %v794 = vmin.f32 %v762, 6.0
      %v795 = vmul.f32 %v541, %v763
      %v796 = vmul.f32 %v546, %v764
      %v797 = vmul.f32 %v551, %v765
      %v798 = vmul.f32 %v556, %v766
      %v799 = vmul.f32 %v561, %v767
      %v800 = vmul.f32 %v566, %v768
      %v801 = vmul.f32 %v571, %v769
      %v802 = vmul.f32 %v576, %v770
      %v803 = vmul.f32 %v581, %v771
      %v804 = vmul.f32 %v586, %v772
      %v805 = vmul.f32 %v591, %v773
      %v806 = vmul.f32 %v596, %v774
      %v807 = vmul.f32 %v601, %v775
      %v808 = vmul.f32 %v606, %v776
      %v809 = vmul.f32 %v611, %v777
      %v810 = vmul.f32 %v616, %v778
      %v811 = vmul.f32 %v621, %v779
      %v812 = vmul.f32 %v626, %v780
      %v813 = vmul.f32 %v631, %v781
      %v814 = vmul.f32 %v636, %v782
      %v815 = vmul.f32 %v641, %v783
      %v816 = vmul.f32 %v646, %v784
      %v817 = vmul.f32 %v651, %v785
      %v818 = vmul.f32 %v656, %v786
      %v819 = vmul.f32 %v661, %v787
      %v820 = vmul.f32 %v666, %v788
      %v821 = vmul.f32 %v671, %v789
      %v822 = vmul.f32 %v676, %v790
      %v823 = vmul.f32 %v681, %v791
      %v824 = vmul.f32 %v686, %v792
      %v825 = vmul.f32 %v691, %v793
      %v826 = vmul.f32 %v696, %v794
      %v827 = vmul.f32 %v795, 0.16666667
      %v828 = vmul.f32 %v796, 0.16666667
      %v829 = vmul.f32 %v797, 0.16666667
      %v830 = vmul.f32 %v798, 0.16666667
      %v831 = vmul.f32 %v799, 0.16666667
      %v832 = vmul.f32 %v800, 0.16666667
      %v833 = vmul.f32 %v801, 0.16666667
      %v834 = vmul.f32 %v802, 0.16666667
      %v835 = vmul.f32 %v803, 0.16666667
      %v836 = vmul.f32 %v804, 0.16666667
      %v837 = vmul.f32 %v805, 0.16666667
      %v838 = vmul.f32 %v806, 0.16666667
      %v839 = vmul.f32 %v807, 0.16666667
      %v840 = vmul.f32 %v808, 0.16666667
      %v841 = vmul.f32 %v809, 0.16666667
      %v842 = vmul.f32 %v810, 0.16666667
      %v843 = vmul.f32 %v811, 0.16666667
      %v844 = vmul.f32 %v812, 0.16666667
      %v845 = vmul.f32 %v813, 0.16666667
      %v846 = vmul.f32 %v814, 0.16666667
      %v847 = vmul.f32 %v815, 0.16666667
      %v848 = vmul.f32 %v816, 0.16666667
      %v849 = vmul.f32 %v817, 0.16666667
      %v850 = vmul.f32 %v818, 0.16666667
      %v851 = vmul.f32 %v819, 0.16666667
      %v852 = vmul.f32 %v820, 0.16666667
      %v853 = vmul.f32 %v821, 0.16666667
      %v854 = vmul.f32 %v822, 0.16666667
      %v855 = vmul.f32 %v823, 0.16666667
      %v856 = vmul.f32 %v824, 0.16666667
      %v857 = vmul.f32 %v825, 0.16666667
      %v858 = vmul.f32 %v826, 0.16666667
      %vm859 = vcmask 130048
      %860 = vst.msk [vmem:[#allocation2] sm:$0xff] %vm859, 0.0
      %861 = vst.msk [vmem:[#allocation2 + $0x8] sm:$0xff] %vm859, 0.0
      %vm862 = vcmask 123904
      %863 = vst.msk [vmem:[#allocation2 + $0x10] sm:$0x3] %vm862, 0.0
      %864 = vst.msk [vmem:[#allocation2 + $0x18] sm:$0xff] %vm859, 0.0
      %865 = vst.msk [vmem:[#allocation2 + $0x20] sm:$0xff] %vm859, 0.0
      %866 = vst.msk [vmem:[#allocation2 + $0x28] sm:$0x3] %vm862, 0.0
      %867 = vst.msk [vmem:[#allocation2 + $0x30] sm:$0xff] %vm859, 0.0
      %868 = vst.msk [vmem:[#allocation2 + $0x38] sm:$0xff] %vm859, 0.0
      %869 = vst.msk [vmem:[#allocation2 + $0x40] sm:$0x3] %vm862, 0.0
      %870 = vst.msk [vmem:[#allocation2 + $0x48] sm:$0xff] %vm859, 0.0
      %871 = vst.msk [vmem:[#allocation2 + $0x50] sm:$0xff] %vm859, 0.0
      %872 = vst.msk [vmem:[#allocation2 + $0x58] sm:$0x3] %vm862, 0.0
      %873 = vst.msk [vmem:[#allocation2 + $0x60] sm:$0xff] %vm859, 0.0
      %874 = vst.msk [vmem:[#allocation2 + $0x68] sm:$0xff] %vm859, 0.0
      %875 = vst.msk [vmem:[#allocation2 + $0x70] sm:$0x3] %vm862, 0.0
      %876 = vst.msk [vmem:[#allocation2 + $0x78] sm:$0xff] %vm859, 0.0
      %877 = vst.msk [vmem:[#allocation2 + $0x80] sm:$0xff] %vm859, 0.0
      %878 = vst.msk [vmem:[#allocation2 + $0x88] sm:$0x3] %vm862, 0.0
      %879 = vst.msk [vmem:[#allocation2 + $0x90] sm:$0xff] %vm859, 0.0
      %880 = vst.msk [vmem:[#allocation2 + $0x98] sm:$0xff] %vm859, 0.0
      %881 = vst.msk [vmem:[#allocation2 + $0xa0] sm:$0x3] %vm862, 0.0
      %882 = vst.msk [vmem:[#allocation2 + $0xa8] sm:$0xff] %vm859, 0.0
      %883 = vst.msk [vmem:[#allocation2 + $0xb0] sm:$0xff] %vm859, 0.0
      %884 = vst.msk [vmem:[#allocation2 + $0xb8] sm:$0x3] %vm862, 0.0
      %885 = vst.msk [vmem:[#allocation2 + $0xc0] sm:$0xff] %vm859, 0.0
      %886 = vst.msk [vmem:[#allocation2 + $0xc8] sm:$0xff] %vm859, 0.0
      %887 = vst.msk [vmem:[#allocation2 + $0xd0] sm:$0x3] %vm862, 0.0
      %888 = vst.msk [vmem:[#allocation2 + $0xd8] sm:$0xff] %vm859, 0.0
      %889 = vst.msk [vmem:[#allocation2 + $0xe0] sm:$0xff] %vm859, 0.0
      %890 = vst.msk [vmem:[#allocation2 + $0xe8] sm:$0x3] %vm862, 0.0
      %891 = vst.msk [vmem:[#allocation2 + $0xf0] sm:$0xff] %vm859, 0.0
      %892 = vst.msk [vmem:[#allocation2 + $0xf8] sm:$0xff] %vm859, 0.0
      %893 = vst.msk [vmem:[#allocation2 + $0x100] sm:$0x3] %vm862, 0.0
      %894 = vst.msk [vmem:[#allocation2 + $0x108] sm:$0xff] %vm859, 0.0
      %895 = vst.msk [vmem:[#allocation2 + $0x110] sm:$0xff] %vm859, 0.0
      %896 = vst.msk [vmem:[#allocation2 + $0x118] sm:$0x3] %vm862, 0.0
      %897 = vst.msk [vmem:[#allocation2 + $0x120] sm:$0xff] %vm859, 0.0
      %898 = vst.msk [vmem:[#allocation2 + $0x128] sm:$0xff] %vm859, 0.0
      %899 = vst.msk [vmem:[#allocation2 + $0x130] sm:$0x3] %vm862, 0.0
      %900 = vst.msk [vmem:[#allocation2 + $0x138] sm:$0xff] %vm859, 0.0
      %901 = vst.msk [vmem:[#allocation2 + $0x140] sm:$0xff] %vm859, 0.0
      %902 = vst.msk [vmem:[#allocation2 + $0x148] sm:$0x3] %vm862, 0.0
      %903 = vst.msk [vmem:[#allocation2 + $0x150] sm:$0xff] %vm859, 0.0
      %904 = vst.msk [vmem:[#allocation2 + $0x158] sm:$0xff] %vm859, 0.0
      %905 = vst.msk [vmem:[#allocation2 + $0x160] sm:$0x3] %vm862, 0.0
      %906 = vst.msk [vmem:[#allocation2 + $0x168] sm:$0xff] %vm859, 0.0
      %907 = vst.msk [vmem:[#allocation2 + $0x170] sm:$0xff] %vm859, 0.0
      %908 = vst.msk [vmem:[#allocation2 + $0x178] sm:$0x3] %vm862, 0.0
      %909 = vst.msk [vmem:[#allocation2 + $0x180] sm:$0xff] %vm859, 0.0
      %910 = vst.msk [vmem:[#allocation2 + $0x188] sm:$0xff] %vm859, 0.0
      %911 = vst.msk [vmem:[#allocation2 + $0x190] sm:$0x3] %vm862, 0.0
      %912 = vst.msk [vmem:[#allocation2 + $0x198] sm:$0xff] %vm859, 0.0
      %913 = vst.msk [vmem:[#allocation2 + $0x1a0] sm:$0xff] %vm859, 0.0
      %914 = vst.msk [vmem:[#allocation2 + $0x1a8] sm:$0x3] %vm862, 0.0
      %s915 = scalar_lea.vmem [#allocation2], 24
      %916 = vst.msk [vmem:[%s915 + $0x1] sm:$0xff] %vm859, %v827
      %917 = vst.msk [vmem:[%s915 + $0x9] sm:$0xff] %vm859, %v828
      %918 = vst.msk [vmem:[%s915 + $0x19] sm:$0xff] %vm859, %v829
      %919 = vst.msk [vmem:[%s915 + $0x21] sm:$0xff] %vm859, %v830
      %920 = vst.msk [vmem:[%s915 + $0x31] sm:$0xff] %vm859, %v831
      %921 = vst.msk [vmem:[%s915 + $0x39] sm:$0xff] %vm859, %v832
      %922 = vst.msk [vmem:[%s915 + $0x49] sm:$0xff] %vm859, %v833
      %923 = vst.msk [vmem:[%s915 + $0x51] sm:$0xff] %vm859, %v834
      %924 = vst.msk [vmem:[%s915 + $0x61] sm:$0xff] %vm859, %v835
      %925 = vst.msk [vmem:[%s915 + $0x69] sm:$0xff] %vm859, %v836
      %926 = vst.msk [vmem:[%s915 + $0x79] sm:$0xff] %vm859, %v837
      %927 = vst.msk [vmem:[%s915 + $0x81] sm:$0xff] %vm859, %v838
      %928 = vst.msk [vmem:[%s915 + $0x91] sm:$0xff] %vm859, %v839
      %929 = vst.msk [vmem:[%s915 + $0x99] sm:$0xff] %vm859, %v840
      %930 = vst.msk [vmem:[%s915 + $0xa9] sm:$0xff] %vm859, %v841
      %931 = vst.msk [vmem:[%s915 + $0xb1] sm:$0xff] %vm859, %v842
      %932 = vst.msk [vmem:[%s915 + $0xc1] sm:$0xff] %vm859, %v843
      %933 = vst.msk [vmem:[%s915 + $0xc9] sm:$0xff] %vm859, %v844
      %934 = vst.msk [vmem:[%s915 + $0xd9] sm:$0xff] %vm859, %v845
      %935 = vst.msk [vmem:[%s915 + $0xe1] sm:$0xff] %vm859, %v846
      %936 = vst.msk [vmem:[%s915 + $0xf1] sm:$0xff] %vm859, %v847
      %937 = vst.msk [vmem:[%s915 + $0xf9] sm:$0xff] %vm859, %v848
      %938 = vst.msk [vmem:[%s915 + $0x109] sm:$0xff] %vm859, %v849
      %939 = vst.msk [vmem:[%s915 + $0x111] sm:$0xff] %vm859, %v850
      %940 = vst.msk [vmem:[%s915 + $0x121] sm:$0xff] %vm859, %v851
      %941 = vst.msk [vmem:[%s915 + $0x129] sm:$0xff] %vm859, %v852
      %942 = vst.msk [vmem:[%s915 + $0x139] sm:$0xff] %vm859, %v853
      %943 = vst.msk [vmem:[%s915 + $0x141] sm:$0xff] %vm859, %v854
      %944 = vst.msk [vmem:[%s915 + $0x151] sm:$0xff] %vm859, %v855
      %945 = vst.msk [vmem:[%s915 + $0x159] sm:$0xff] %vm859, %v856
      %946 = vst.msk [vmem:[%s915 + $0x169] sm:$0xff] %vm859, %v857
      %947 = vst.msk [vmem:[%s915 + $0x171] sm:$0xff] %vm859, %v858
      %v948 = vld [vmem:[%s3] sm:$0xff]
      %v949 = vld [vmem:[%s3 + $0x8] sm:$0x1]
      %v950 = vld [vmem:[#allocation2] sm:$0xff]
      %v951 = vld [vmem:[#allocation2 + $0x8] sm:$0xff]
      %v952 = vld [vmem:[#allocation2 + $0x18] sm:$0xff]
      %v953 = vld [vmem:[#allocation2 + $0x20] sm:$0xff]
      %v954 = vld [vmem:[#allocation2 + $0x30] sm:$0xff]
      %v955 = vld [vmem:[#allocation2 + $0x38] sm:$0xff]
      %v956 = vld [vmem:[#allocation2 + $0x48] sm:$0xff]
      %v957 = vld [vmem:[#allocation2 + $0x50] sm:$0xff]
      %v958 = vld [vmem:[#allocation2 + $0x60] sm:$0xff]
      %v959 = vld [vmem:[#allocation2 + $0x68] sm:$0xff]
      %v960 = vld [vmem:[#allocation2 + $0x78] sm:$0xff]
      %v961 = vld [vmem:[#allocation2 + $0x80] sm:$0xff]
      %v962 = vld [vmem:[#allocation2 + $0x90] sm:$0xff]
      %v963 = vld [vmem:[#allocation2 + $0x98] sm:$0xff]
      %v964 = vld [vmem:[#allocation2 + $0xa8] sm:$0xff]
      %v965 = vld [vmem:[#allocation2 + $0xb0] sm:$0xff]
      %v966 = vld [vmem:[#allocation2 + $0xc0] sm:$0xff]
      %v967 = vld [vmem:[#allocation2 + $0xc8] sm:$0xff]
      %v968 = vld [vmem:[#allocation2 + $0xd8] sm:$0xff]
      %v969 = vld [vmem:[#allocation2 + $0xe0] sm:$0xff]
      %v970 = vld [vmem:[#allocation2 + $0xf0] sm:$0xff]
      %v971 = vld [vmem:[#allocation2 + $0xf8] sm:$0xff]
      %v972 = vld [vmem:[#allocation2 + $0x108] sm:$0xff]
      %v973 = vld [vmem:[#allocation2 + $0x110] sm:$0xff]
      %v974 = vld [vmem:[#allocation2 + $0x120] sm:$0xff]
      %v975 = vld [vmem:[#allocation2 + $0x128] sm:$0xff]
      %v976 = vld [vmem:[#allocation2 + $0x138] sm:$0xff]
      %v977 = vld [vmem:[#allocation2 + $0x140] sm:$0xff]
      %v978 = vld [vmem:[#allocation2 + $0x150] sm:$0xff]
      %v979 = vld [vmem:[#allocation2 + $0x158] sm:$0xff]
      %v980 = vld [vmem:[#allocation2 + $0x168] sm:$0xff]
      %v981 = vld [vmem:[#allocation2 + $0x170] sm:$0xff]
      %v982 = vlaneseq
      %v983 = vshrl.u32 %v982, 7
      %v984 = vsub.s32 0, %v983
      %v985 = vrot.slane %v948, %v984
      %v986 = vmul.f32 %v950, %v985
      %v987 = vmul.f32 %v951, %v985
      %v988 = vmul.f32 %v952, %v985
      %v989 = vmul.f32 %v953, %v985
      %v990 = vmul.f32 %v954, %v985
      %v991 = vmul.f32 %v955, %v985
      %v992 = vmul.f32 %v956, %v985
      %v993 = vmul.f32 %v957, %v985
      %v994 = vmul.f32 %v958, %v985
      %v995 = vmul.f32 %v959, %v985
      %v996 = vmul.f32 %v960, %v985
      %v997 = vmul.f32 %v961, %v985
      %v998 = vmul.f32 %v962, %v985
      %v999 = vmul.f32 %v963, %v985
      %v1000 = vmul.f32 %v964, %v985
      %v1001 = vmul.f32 %v965, %v985
      %v1002 = vmul.f32 %v966, %v985
      %v1003 = vmul.f32 %v967, %v985
      %v1004 = vmul.f32 %v968, %v985
      %v1005 = vmul.f32 %v969, %v985
      %v1006 = vmul.f32 %v970, %v985
      %v1007 = vmul.f32 %v971, %v985
      %v1008 = vmul.f32 %v972, %v985
      %v1009 = vmul.f32 %v973, %v985
      %v1010 = vmul.f32 %v974, %v985
      %v1011 = vmul.f32 %v975, %v985
      %v1012 = vmul.f32 %v976, %v985
      %v1013 = vmul.f32 %v977, %v985
      %v1014 = vmul.f32 %v978, %v985
      %v1015 = vmul.f32 %v979, %v985
      %v1016 = vmul.f32 %v980, %v985
      %v1017 = vmul.f32 %v981, %v985
      %v1018 = vadd.f32 %v986, 0.0
      %v1019 = vadd.f32 %v987, 0.0
      %v1020 = vadd.f32 %v988, 0.0
      %v1021 = vadd.f32 %v989, 0.0
      %v1022 = vadd.f32 %v990, 0.0
      %v1023 = vadd.f32 %v991, 0.0
      %v1024 = vadd.f32 %v992, 0.0
      %v1025 = vadd.f32 %v993, 0.0
      %v1026 = vadd.f32 %v994, 0.0
      %v1027 = vadd.f32 %v995, 0.0
      %v1028 = vadd.f32 %v996, 0.0
      %v1029 = vadd.f32 %v997, 0.0
      %v1030 = vadd.f32 %v998, 0.0
      %v1031 = vadd.f32 %v999, 0.0
      %v1032 = vadd.f32 %v1000, 0.0
      %v1033 = vadd.f32 %v1001, 0.0
      %v1034 = vadd.f32 %v1002, 0.0
      %v1035 = vadd.f32 %v1003, 0.0
      %v1036 = vadd.f32 %v1004, 0.0
      %v1037 = vadd.f32 %v1005, 0.0
      %v1038 = vadd.f32 %v1006, 0.0
      %v1039 = vadd.f32 %v1007, 0.0
      %v1040 = vadd.f32 %v1008, 0.0
      %v1041 = vadd.f32 %v1009, 0.0
      %v1042 = vadd.f32 %v1010, 0.0
      %v1043 = vadd.f32 %v1011, 0.0
      %v1044 = vadd.f32 %v1012, 0.0
      %v1045 = vadd.f32 %v1013, 0.0
      %v1046 = vadd.f32 %v1014, 0.0
      %v1047 = vadd.f32 %v1015, 0.0
      %v1048 = vadd.f32 %v1016, 0.0
      %v1049 = vadd.f32 %v1017, 0.0
      %v1050 = vld [vmem:[#allocation2 + $0x1] sm:$0xff]
      %v1051 = vld [vmem:[#allocation2 + $0x9] sm:$0xff]
      %v1052 = vld [vmem:[#allocation2 + $0x19] sm:$0xff]
      %v1053 = vld [vmem:[#allocation2 + $0x21] sm:$0xff]
      %v1054 = vld [vmem:[#allocation2 + $0x31] sm:$0xff]
      %v1055 = vld [vmem:[#allocation2 + $0x39] sm:$0xff]
      %v1056 = vld [vmem:[#allocation2 + $0x49] sm:$0xff]
      %v1057 = vld [vmem:[#allocation2 + $0x51] sm:$0xff]
      %v1058 = vld [vmem:[#allocation2 + $0x61] sm:$0xff]
      %v1059 = vld [vmem:[#allocation2 + $0x69] sm:$0xff]
      %v1060 = vld [vmem:[#allocation2 + $0x79] sm:$0xff]
      %v1061 = vld [vmem:[#allocation2 + $0x81] sm:$0xff]
      %v1062 = vld [vmem:[#allocation2 + $0x91] sm:$0xff]
      %v1063 = vld [vmem:[#allocation2 + $0x99] sm:$0xff]
      %v1064 = vld [vmem:[#allocation2 + $0xa9] sm:$0xff]
      %v1065 = vld [vmem:[#allocation2 + $0xb1] sm:$0xff]
      %v1066 = vld [vmem:[#allocation2 + $0xc1] sm:$0xff]
      %v1067 = vld [vmem:[#allocation2 + $0xc9] sm:$0xff]
      %v1068 = vld [vmem:[#allocation2 + $0xd9] sm:$0xff]
      %v1069 = vld [vmem:[#allocation2 + $0xe1] sm:$0xff]
      %v1070 = vld [vmem:[#allocation2 + $0xf1] sm:$0xff]
      %v1071 = vld [vmem:[#allocation2 + $0xf9] sm:$0xff]
      %v1072 = vld [vmem:[#allocation2 + $0x109] sm:$0xff]
      %v1073 = vld [vmem:[#allocation2 + $0x111] sm:$0xff]
      %v1074 = vld [vmem:[#allocation2 + $0x121] sm:$0xff]
      %v1075 = vld [vmem:[#allocation2 + $0x129] sm:$0xff]
      %v1076 = vld [vmem:[#allocation2 + $0x139] sm:$0xff]
      %v1077 = vld [vmem:[#allocation2 + $0x141] sm:$0xff]
      %v1078 = vld [vmem:[#allocation2 + $0x151] sm:$0xff]
      %v1079 = vld [vmem:[#allocation2 + $0x159] sm:$0xff]
      %v1080 = vld [vmem:[#allocation2 + $0x169] sm:$0xff]
      %v1081 = vld [vmem:[#allocation2 + $0x171] sm:$0xff]
      %v1082 = vlaneseq
      %v1083 = vshrl.u32 %v1082, 7
      %v1084 = vsub.s32 1, %v1083
      %v1085 = vrot.slane %v948, %v1084
      %v1086 = vmul.f32 %v1050, %v1085
      %v1087 = vmul.f32 %v1051, %v1085
      %v1088 = vmul.f32 %v1052, %v1085
      %v1089 = vmul.f32 %v1053, %v1085
      %v1090 = vmul.f32 %v1054, %v1085
      %v1091 = vmul.f32 %v1055, %v1085
      %v1092 = vmul.f32 %v1056, %v1085
      %v1093 = vmul.f32 %v1057, %v1085
      %v1094 = vmul.f32 %v1058, %v1085
      %v1095 = vmul.f32 %v1059, %v1085
      %v1096 = vmul.f32 %v1060, %v1085
      %v1097 = vmul.f32 %v1061, %v1085
      %v1098 = vmul.f32 %v1062, %v1085
      %v1099 = vmul.f32 %v1063, %v1085
      %v1100 = vmul.f32 %v1064, %v1085
      %v1101 = vmul.f32 %v1065, %v1085
      %v1102 = vmul.f32 %v1066, %v1085
      %v1103 = vmul.f32 %v1067, %v1085
      %v1104 = vmul.f32 %v1068, %v1085
      %v1105 = vmul.f32 %v1069, %v1085
      %v1106 = vmul.f32 %v1070, %v1085
      %v1107 = vmul.f32 %v1071, %v1085
      %v1108 = vmul.f32 %v1072, %v1085
      %v1109 = vmul.f32 %v1073, %v1085
      %v1110 = vmul.f32 %v1074, %v1085
      %v1111 = vmul.f32 %v1075, %v1085
      %v1112 = vmul.f32 %v1076, %v1085
      %v1113 = vmul.f32 %v1077, %v1085
      %v1114 = vmul.f32 %v1078, %v1085
      %v1115 = vmul.f32 %v1079, %v1085
      %v1116 = vmul.f32 %v1080, %v1085
      %v1117 = vmul.f32 %v1081, %v1085
      %v1118 = vadd.f32 %v1018, %v1086
      %v1119 = vadd.f32 %v1019, %v1087
      %v1120 = vadd.f32 %v1020, %v1088
      %v1121 = vadd.f32 %v1021, %v1089
      %v1122 = vadd.f32 %v1022, %v1090
      %v1123 = vadd.f32 %v1023, %v1091
      %v1124 = vadd.f32 %v1024, %v1092
      %v1125 = vadd.f32 %v1025, %v1093
      %v1126 = vadd.f32 %v1026, %v1094
      %v1127 = vadd.f32 %v1027, %v1095
      %v1128 = vadd.f32 %v1028, %v1096
      %v1129 = vadd.f32 %v1029, %v1097
      %v1130 = vadd.f32 %v1030, %v1098
      %v1131 = vadd.f32 %v1031, %v1099
      %v1132 = vadd.f32 %v1032, %v1100
      %v1133 = vadd.f32 %v1033, %v1101
      %v1134 = vadd.f32 %v1034, %v1102
      %v1135 = vadd.f32 %v1035, %v1103
      %v1136 = vadd.f32 %v1036, %v1104
      %v1137 = vadd.f32 %v1037, %v1105
      %v1138 = vadd.f32 %v1038, %v1106
      %v1139 = vadd.f32 %v1039, %v1107
      %v1140 = vadd.f32 %v1040, %v1108
      %v1141 = vadd.f32 %v1041, %v1109
      %v1142 = vadd.f32 %v1042, %v1110
      %v1143 = vadd.f32 %v1043, %v1111
      %v1144 = vadd.f32 %v1044, %v1112
      %v1145 = vadd.f32 %v1045, %v1113
      %v1146 = vadd.f32 %v1046, %v1114
      %v1147 = vadd.f32 %v1047, %v1115
      %v1148 = vadd.f32 %v1048, %v1116
      %v1149 = vadd.f32 %v1049, %v1117
      %v1150 = vld [vmem:[#allocation2 + $0x2] sm:$0xff]
      %v1151 = vld [vmem:[#allocation2 + $0xa] sm:$0xff]
      %v1152 = vld [vmem:[#allocation2 + $0x1a] sm:$0xff]
      %v1153 = vld [vmem:[#allocation2 + $0x22] sm:$0xff]
      %v1154 = vld [vmem:[#allocation2 + $0x32] sm:$0xff]
      %v1155 = vld [vmem:[#allocation2 + $0x3a] sm:$0xff]
      %v1156 = vld [vmem:[#allocation2 + $0x4a] sm:$0xff]
      %v1157 = vld [vmem:[#allocation2 + $0x52] sm:$0xff]
      %v1158 = vld [vmem:[#allocation2 + $0x62] sm:$0xff]
      %v1159 = vld [vmem:[#allocation2 + $0x6a] sm:$0xff]
      %v1160 = vld [vmem:[#allocation2 + $0x7a] sm:$0xff]
      %v1161 = vld [vmem:[#allocation2 + $0x82] sm:$0xff]
      %v1162 = vld [vmem:[#allocation2 + $0x92] sm:$0xff]
      %v1163 = vld [vmem:[#allocation2 + $0x9a] sm:$0xff]
      %v1164 = vld [vmem:[#allocation2 + $0xaa] sm:$0xff]
      %v1165 = vld [vmem:[#allocation2 + $0xb2] sm:$0xff]
      %v1166 = vld [vmem:[#allocation2 + $0xc2] sm:$0xff]
      %v1167 = vld [vmem:[#allocation2 + $0xca] sm:$0xff]
      %v1168 = vld [vmem:[#allocation2 + $0xda] sm:$0xff]
      %v1169 = vld [vmem:[#allocation2 + $0xe2] sm:$0xff]
      %v1170 = vld [vmem:[#allocation2 + $0xf2] sm:$0xff]
      %v1171 = vld [vmem:[#allocation2 + $0xfa] sm:$0xff]
      %v1172 = vld [vmem:[#allocation2 + $0x10a] sm:$0xff]
      %v1173 = vld [vmem:[#allocation2 + $0x112] sm:$0xff]
      %v1174 = vld [vmem:[#allocation2 + $0x122] sm:$0xff]
      %v1175 = vld [vmem:[#allocation2 + $0x12a] sm:$0xff]
      %v1176 = vld [vmem:[#allocation2 + $0x13a] sm:$0xff]
      %v1177 = vld [vmem:[#allocation2 + $0x142] sm:$0xff]
      %v1178 = vld [vmem:[#allocation2 + $0x152] sm:$0xff]
      %v1179 = vld [vmem:[#allocation2 + $0x15a] sm:$0xff]
      %v1180 = vld [vmem:[#allocation2 + $0x16a] sm:$0xff]
      %v1181 = vld [vmem:[#allocation2 + $0x172] sm:$0xff]
      %v1182 = vlaneseq
      %v1183 = vshrl.u32 %v1182, 7
      %v1184 = vsub.s32 2, %v1183
      %v1185 = vrot.slane %v948, %v1184
      %v1186 = vmul.f32 %v1150, %v1185
      %v1187 = vmul.f32 %v1151, %v1185
      %v1188 = vmul.f32 %v1152, %v1185
      %v1189 = vmul.f32 %v1153, %v1185
      %v1190 = vmul.f32 %v1154, %v1185
      %v1191 = vmul.f32 %v1155, %v1185
      %v1192 = vmul.f32 %v1156, %v1185
      %v1193 = vmul.f32 %v1157, %v1185
      %v1194 = vmul.f32 %v1158, %v1185
      %v1195 = vmul.f32 %v1159, %v1185
      %v1196 = vmul.f32 %v1160, %v1185
      %v1197 = vmul.f32 %v1161, %v1185
      %v1198 = vmul.f32 %v1162, %v1185
      %v1199 = vmul.f32 %v1163, %v1185
      %v1200 = vmul.f32 %v1164, %v1185
      %v1201 = vmul.f32 %v1165, %v1185
      %v1202 = vmul.f32 %v1166, %v1185
      %v1203 = vmul.f32 %v1167, %v1185
      %v1204 = vmul.f32 %v1168, %v1185
      %v1205 = vmul.f32 %v1169, %v1185
      %v1206 = vmul.f32 %v1170, %v1185
      %v1207 = vmul.f32 %v1171, %v1185
      %v1208 = vmul.f32 %v1172, %v1185
      %v1209 = vmul.f32 %v1173, %v1185
      %v1210 = vmul.f32 %v1174, %v1185
      %v1211 = vmul.f32 %v1175, %v1185
      %v1212 = vmul.f32 %v1176, %v1185
      %v1213 = vmul.f32 %v1177, %v1185
      %v1214 = vmul.f32 %v1178, %v1185
      %v1215 = vmul.f32 %v1179, %v1185
      %v1216 = vmul.f32 %v1180, %v1185
      %v1217 = vmul.f32 %v1181, %v1185
      %v1218 = vadd.f32 %v1118, %v1186
      %v1219 = vadd.f32 %v1119, %v1187
      %v1220 = vadd.f32 %v1120, %v1188
      %v1221 = vadd.f32 %v1121, %v1189
      %v1222 = vadd.f32 %v1122, %v1190
      %v1223 = vadd.f32 %v1123, %v1191
      %v1224 = vadd.f32 %v1124, %v1192
      %v1225 = vadd.f32 %v1125, %v1193
      %v1226 = vadd.f32 %v1126, %v1194
      %v1227 = vadd.f32 %v1127, %v1195
      %v1228 = vadd.f32 %v1128, %v1196
      %v1229 = vadd.f32 %v1129, %v1197
      %v1230 = vadd.f32 %v1130, %v1198
      %v1231 = vadd.f32 %v1131, %v1199
      %v1232 = vadd.f32 %v1132, %v1200
      %v1233 = vadd.f32 %v1133, %v1201
      %v1234 = vadd.f32 %v1134, %v1202
      %v1235 = vadd.f32 %v1135, %v1203
      %v1236 = vadd.f32 %v1136, %v1204
      %v1237 = vadd.f32 %v1137, %v1205
      %v1238 = vadd.f32 %v1138, %v1206
      %v1239 = vadd.f32 %v1139, %v1207
      %v1240 = vadd.f32 %v1140, %v1208
      %v1241 = vadd.f32 %v1141, %v1209
      %v1242 = vadd.f32 %v1142, %v1210
      %v1243 = vadd.f32 %v1143, %v1211
      %v1244 = vadd.f32 %v1144, %v1212
      %v1245 = vadd.f32 %v1145, %v1213
      %v1246 = vadd.f32 %v1146, %v1214
      %v1247 = vadd.f32 %v1147, %v1215
      %v1248 = vadd.f32 %v1148, %v1216
      %v1249 = vadd.f32 %v1149, %v1217
      %v1250 = vld [vmem:[%s915] sm:$0xff]
      %v1251 = vld [vmem:[%s915 + $0x8] sm:$0xff]
      %v1252 = vld [vmem:[%s915 + $0x18] sm:$0xff]
      %v1253 = vld [vmem:[%s915 + $0x20] sm:$0xff]
      %v1254 = vld [vmem:[%s915 + $0x30] sm:$0xff]
      %v1255 = vld [vmem:[%s915 + $0x38] sm:$0xff]
      %v1256 = vld [vmem:[%s915 + $0x48] sm:$0xff]
      %v1257 = vld [vmem:[%s915 + $0x50] sm:$0xff]
      %v1258 = vld [vmem:[%s915 + $0x60] sm:$0xff]
      %v1259 = vld [vmem:[%s915 + $0x68] sm:$0xff]
      %v1260 = vld [vmem:[%s915 + $0x78] sm:$0xff]
      %v1261 = vld [vmem:[%s915 + $0x80] sm:$0xff]
      %v1262 = vld [vmem:[%s915 + $0x90] sm:$0xff]
      %v1263 = vld [vmem:[%s915 + $0x98] sm:$0xff]
      %v1264 = vld [vmem:[%s915 + $0xa8] sm:$0xff]
      %v1265 = vld [vmem:[%s915 + $0xb0] sm:$0xff]
      %v1266 = vld [vmem:[%s915 + $0xc0] sm:$0xff]
      %v1267 = vld [vmem:[%s915 + $0xc8] sm:$0xff]
      %v1268 = vld [vmem:[%s915 + $0xd8] sm:$0xff]
      %v1269 = vld [vmem:[%s915 + $0xe0] sm:$0xff]
      %v1270 = vld [vmem:[%s915 + $0xf0] sm:$0xff]
      %v1271 = vld [vmem:[%s915 + $0xf8] sm:$0xff]
      %v1272 = vld [vmem:[%s915 + $0x108] sm:$0xff]
      %v1273 = vld [vmem:[%s915 + $0x110] sm:$0xff]
      %v1274 = vld [vmem:[%s915 + $0x120] sm:$0xff]
      %v1275 = vld [vmem:[%s915 + $0x128] sm:$0xff]
      %v1276 = vld [vmem:[%s915 + $0x138] sm:$0xff]
      %v1277 = vld [vmem:[%s915 + $0x140] sm:$0xff]
      %v1278 = vld [vmem:[%s915 + $0x150] sm:$0xff]
      %v1279 = vld [vmem:[%s915 + $0x158] sm:$0xff]
      %v1280 = vld [vmem:[%s915 + $0x168] sm:$0xff]
      %v1281 = vld [vmem:[%s915 + $0x170] sm:$0xff]
      %v1282 = vlaneseq
      %v1283 = vshrl.u32 %v1282, 7
      %v1284 = vsub.s32 3, %v1283
      %v1285 = vrot.slane %v948, %v1284
      %v1286 = vmul.f32 %v1250, %v1285
      %v1287 = vmul.f32 %v1251, %v1285
      %v1288 = vmul.f32 %v1252, %v1285
      %v1289 = vmul.f32 %v1253, %v1285
      %v1290 = vmul.f32 %v1254, %v1285
      %v1291 = vmul.f32 %v1255, %v1285
      %v1292 = vmul.f32 %v1256, %v1285
      %v1293 = vmul.f32 %v1257, %v1285
      %v1294 = vmul.f32 %v1258, %v1285
      %v1295 = vmul.f32 %v1259, %v1285
      %v1296 = vmul.f32 %v1260, %v1285
      %v1297 = vmul.f32 %v1261, %v1285
      %v1298 = vmul.f32 %v1262, %v1285
      %v1299 = vmul.f32 %v1263, %v1285
      %v1300 = vmul.f32 %v1264, %v1285
      %v1301 = vmul.f32 %v1265, %v1285
      %v1302 = vmul.f32 %v1266, %v1285
      %v1303 = vmul.f32 %v1267, %v1285
      %v1304 = vmul.f32 %v1268, %v1285
      %v1305 = vmul.f32 %v1269, %v1285
      %v1306 = vmul.f32 %v1270, %v1285
      %v1307 = vmul.f32 %v1271, %v1285
      %v1308 = vmul.f32 %v1272, %v1285
      %v1309 = vmul.f32 %v1273, %v1285
      %v1310 = vmul.f32 %v1274, %v1285
      %v1311 = vmul.f32 %v1275, %v1285
      %v1312 = vmul.f32 %v1276, %v1285
      %v1313 = vmul.f32 %v1277, %v1285
      %v1314 = vmul.f32 %v1278, %v1285
      %v1315 = vmul.f32 %v1279, %v1285
      %v1316 = vmul.f32 %v1280, %v1285
      %v1317 = vmul.f32 %v1281, %v1285
      %v1318 = vadd.f32 %v1218, %v1286
      %v1319 = vadd.f32 %v1219, %v1287
      %v1320 = vadd.f32 %v1220, %v1288
      %v1321 = vadd.f32 %v1221, %v1289
      %v1322 = vadd.f32 %v1222, %v1290
      %v1323 = vadd.f32 %v1223, %v1291
      %v1324 = vadd.f32 %v1224, %v1292
      %v1325 = vadd.f32 %v1225, %v1293
      %v1326 = vadd.f32 %v1226, %v1294
      %v1327 = vadd.f32 %v1227, %v1295
      %v1328 = vadd.f32 %v1228, %v1296
      %v1329 = vadd.f32 %v1229, %v1297
      %v1330 = vadd.f32 %v1230, %v1298
      %v1331 = vadd.f32 %v1231, %v1299
      %v1332 = vadd.f32 %v1232, %v1300
      %v1333 = vadd.f32 %v1233, %v1301
      %v1334 = vadd.f32 %v1234, %v1302
      %v1335 = vadd.f32 %v1235, %v1303
      %v1336 = vadd.f32 %v1236, %v1304
      %v1337 = vadd.f32 %v1237, %v1305
      %v1338 = vadd.f32 %v1238, %v1306
      %v1339 = vadd.f32 %v1239, %v1307
      %v1340 = vadd.f32 %v1240, %v1308
      %v1341 = vadd.f32 %v1241, %v1309
      %v1342 = vadd.f32 %v1242, %v1310
      %v1343 = vadd.f32 %v1243, %v1311
      %v1344 = vadd.f32 %v1244, %v1312
      %v1345 = vadd.f32 %v1245, %v1313
      %v1346 = vadd.f32 %v1246, %v1314
      %v1347 = vadd.f32 %v1247, %v1315
      %v1348 = vadd.f32 %v1248, %v1316
      %v1349 = vadd.f32 %v1249, %v1317
      %v1350 = vld [vmem:[%s915 + $0x1] sm:$0xff]
      %v1351 = vld [vmem:[%s915 + $0x9] sm:$0xff]
      %v1352 = vld [vmem:[%s915 + $0x19] sm:$0xff]
      %v1353 = vld [vmem:[%s915 + $0x21] sm:$0xff]
      %v1354 = vld [vmem:[%s915 + $0x31] sm:$0xff]
      %v1355 = vld [vmem:[%s915 + $0x39] sm:$0xff]
      %v1356 = vld [vmem:[%s915 + $0x49] sm:$0xff]
      %v1357 = vld [vmem:[%s915 + $0x51] sm:$0xff]
      %v1358 = vld [vmem:[%s915 + $0x61] sm:$0xff]
      %v1359 = vld [vmem:[%s915 + $0x69] sm:$0xff]
      %v1360 = vld [vmem:[%s915 + $0x79] sm:$0xff]
      %v1361 = vld [vmem:[%s915 + $0x81] sm:$0xff]
      %v1362 = vld [vmem:[%s915 + $0x91] sm:$0xff]
      %v1363 = vld [vmem:[%s915 + $0x99] sm:$0xff]
      %v1364 = vld [vmem:[%s915 + $0xa9] sm:$0xff]
      %v1365 = vld [vmem:[%s915 + $0xb1] sm:$0xff]
      %v1366 = vld [vmem:[%s915 + $0xc1] sm:$0xff]
      %v1367 = vld [vmem:[%s915 + $0xc9] sm:$0xff]
      %v1368 = vld [vmem:[%s915 + $0xd9] sm:$0xff]
      %v1369 = vld [vmem:[%s915 + $0xe1] sm:$0xff]
      %v1370 = vld [vmem:[%s915 + $0xf1] sm:$0xff]
      %v1371 = vld [vmem:[%s915 + $0xf9] sm:$0xff]
      %v1372 = vld [vmem:[%s915 + $0x109] sm:$0xff]
      %v1373 = vld [vmem:[%s915 + $0x111] sm:$0xff]
      %v1374 = vld [vmem:[%s915 + $0x121] sm:$0xff]
      %v1375 = vld [vmem:[%s915 + $0x129] sm:$0xff]
      %v1376 = vld [vmem:[%s915 + $0x139] sm:$0xff]
      %v1377 = vld [vmem:[%s915 + $0x141] sm:$0xff]
      %v1378 = vld [vmem:[%s915 + $0x151] sm:$0xff]
      %v1379 = vld [vmem:[%s915 + $0x159] sm:$0xff]
      %v1380 = vld [vmem:[%s915 + $0x169] sm:$0xff]
      %v1381 = vld [vmem:[%s915 + $0x171] sm:$0xff]
      %v1382 = vlaneseq
      %v1383 = vshrl.u32 %v1382, 7
      %v1384 = vsub.s32 4, %v1383
      %v1385 = vrot.slane %v948, %v1384
      %v1386 = vmul.f32 %v1350, %v1385
      %v1387 = vmul.f32 %v1351, %v1385
      %v1388 = vmul.f32 %v1352, %v1385
      %v1389 = vmul.f32 %v1353, %v1385
      %v1390 = vmul.f32 %v1354, %v1385
      %v1391 = vmul.f32 %v1355, %v1385
      %v1392 = vmul.f32 %v1356, %v1385
      %v1393 = vmul.f32 %v1357, %v1385
      %v1394 = vmul.f32 %v1358, %v1385
      %v1395 = vmul.f32 %v1359, %v1385
      %v1396 = vmul.f32 %v1360, %v1385
      %v1397 = vmul.f32 %v1361, %v1385
      %v1398 = vmul.f32 %v1362, %v1385
      %v1399 = vmul.f32 %v1363, %v1385
      %v1400 = vmul.f32 %v1364, %v1385
      %v1401 = vmul.f32 %v1365, %v1385
      %v1402 = vmul.f32 %v1366, %v1385
      %v1403 = vmul.f32 %v1367, %v1385
      %v1404 = vmul.f32 %v1368, %v1385
      %v1405 = vmul.f32 %v1369, %v1385
      %v1406 = vmul.f32 %v1370, %v1385
      %v1407 = vmul.f32 %v1371, %v1385
      %v1408 = vmul.f32 %v1372, %v1385
      %v1409 = vmul.f32 %v1373, %v1385
      %v1410 = vmul.f32 %v1374, %v1385
      %v1411 = vmul.f32 %v1375, %v1385
      %v1412 = vmul.f32 %v1376, %v1385
      %v1413 = vmul.f32 %v1377, %v1385
      %v1414 = vmul.f32 %v1378, %v1385
      %v1415 = vmul.f32 %v1379, %v1385
      %v1416 = vmul.f32 %v1380, %v1385
      %v1417 = vmul.f32 %v1381, %v1385
      %v1418 = vadd.f32 %v1318, %v1386
      %v1419 = vadd.f32 %v1319, %v1387
      %v1420 = vadd.f32 %v1320, %v1388
      %v1421 = vadd.f32 %v1321, %v1389
      %v1422 = vadd.f32 %v1322, %v1390
      %v1423 = vadd.f32 %v1323, %v1391
      %v1424 = vadd.f32 %v1324, %v1392
      %v1425 = vadd.f32 %v1325, %v1393
      %v1426 = vadd.f32 %v1326, %v1394
      %v1427 = vadd.f32 %v1327, %v1395
      %v1428 = vadd.f32 %v1328, %v1396
      %v1429 = vadd.f32 %v1329, %v1397
      %v1430 = vadd.f32 %v1330, %v1398
      %v1431 = vadd.f32 %v1331, %v1399
      %v1432 = vadd.f32 %v1332, %v1400
      %v1433 = vadd.f32 %v1333, %v1401
      %v1434 = vadd.f32 %v1334, %v1402
      %v1435 = vadd.f32 %v1335, %v1403
      %v1436 = vadd.f32 %v1336, %v1404
      %v1437 = vadd.f32 %v1337, %v1405
      %v1438 = vadd.f32 %v1338, %v1406
      %v1439 = vadd.f32 %v1339, %v1407
      %v1440 = vadd.f32 %v1340, %v1408
      %v1441 = vadd.f32 %v1341, %v1409
      %v1442 = vadd.f32 %v1342, %v1410
      %v1443 = vadd.f32 %v1343, %v1411
      %v1444 = vadd.f32 %v1344, %v1412
      %v1445 = vadd.f32 %v1345, %v1413
      %v1446 = vadd.f32 %v1346, %v1414
      %v1447 = vadd.f32 %v1347, %v1415
      %v1448 = vadd.f32 %v1348, %v1416
      %v1449 = vadd.f32 %v1349, %v1417
      %v1450 = vld [vmem:[%s915 + $0x2] sm:$0xff]
      %v1451 = vld [vmem:[%s915 + $0xa] sm:$0xff]
      %v1452 = vld [vmem:[%s915 + $0x1a] sm:$0xff]
      %v1453 = vld [vmem:[%s915 + $0x22] sm:$0xff]
      %v1454 = vld [vmem:[%s915 + $0x32] sm:$0xff]
      %v1455 = vld [vmem:[%s915 + $0x3a] sm:$0xff]
      %v1456 = vld [vmem:[%s915 + $0x4a] sm:$0xff]
      %v1457 = vld [vmem:[%s915 + $0x52] sm:$0xff]
      %v1458 = vld [vmem:[%s915 + $0x62] sm:$0xff]
      %v1459 = vld [vmem:[%s915 + $0x6a] sm:$0xff]
      %v1460 = vld [vmem:[%s915 + $0x7a] sm:$0xff]
      %v1461 = vld [vmem:[%s915 + $0x82] sm:$0xff]
      %v1462 = vld [vmem:[%s915 + $0x92] sm:$0xff]
      %v1463 = vld [vmem:[%s915 + $0x9a] sm:$0xff]
      %v1464 = vld [vmem:[%s915 + $0xaa] sm:$0xff]
      %v1465 = vld [vmem:[%s915 + $0xb2] sm:$0xff]
      %v1466 = vld [vmem:[%s915 + $0xc2] sm:$0xff]
      %v1467 = vld [vmem:[%s915 + $0xca] sm:$0xff]
      %v1468 = vld [vmem:[%s915 + $0xda] sm:$0xff]
      %v1469 = vld [vmem:[%s915 + $0xe2] sm:$0xff]
      %v1470 = vld [vmem:[%s915 + $0xf2] sm:$0xff]
      %v1471 = vld [vmem:[%s915 + $0xfa] sm:$0xff]
      %v1472 = vld [vmem:[%s915 + $0x10a] sm:$0xff]
      %v1473 = vld [vmem:[%s915 + $0x112] sm:$0xff]
      %v1474 = vld [vmem:[%s915 + $0x122] sm:$0xff]
      %v1475 = vld [vmem:[%s915 + $0x12a] sm:$0xff]
      %v1476 = vld [vmem:[%s915 + $0x13a] sm:$0xff]
      %v1477 = vld [vmem:[%s915 + $0x142] sm:$0xff]
      %v1478 = vld [vmem:[%s915 + $0x152] sm:$0xff]
      %v1479 = vld [vmem:[%s915 + $0x15a] sm:$0xff]
      %v1480 = vld [vmem:[%s915 + $0x16a] sm:$0xff]
      %v1481 = vld [vmem:[%s915 + $0x172] sm:$0xff]
      %v1482 = vlaneseq
      %v1483 = vshrl.u32 %v1482, 7
      %v1484 = vsub.s32 5, %v1483
      %v1485 = vrot.slane %v948, %v1484
      %v1486 = vmul.f32 %v1450, %v1485
      %v1487 = vmul.f32 %v1451, %v1485
      %v1488 = vmul.f32 %v1452, %v1485
      %v1489 = vmul.f32 %v1453, %v1485
      %v1490 = vmul.f32 %v1454, %v1485
      %v1491 = vmul.f32 %v1455, %v1485
      %v1492 = vmul.f32 %v1456, %v1485
      %v1493 = vmul.f32 %v1457, %v1485
      %v1494 = vmul.f32 %v1458, %v1485
      %v1495 = vmul.f32 %v1459, %v1485
      %v1496 = vmul.f32 %v1460, %v1485
      %v1497 = vmul.f32 %v1461, %v1485
      %v1498 = vmul.f32 %v1462, %v1485
      %v1499 = vmul.f32 %v1463, %v1485
      %v1500 = vmul.f32 %v1464, %v1485
      %v1501 = vmul.f32 %v1465, %v1485
      %v1502 = vmul.f32 %v1466, %v1485
      %v1503 = vmul.f32 %v1467, %v1485
      %v1504 = vmul.f32 %v1468, %v1485
      %v1505 = vmul.f32 %v1469, %v1485
      %v1506 = vmul.f32 %v1470, %v1485
      %v1507 = vmul.f32 %v1471, %v1485
      %v1508 = vmul.f32 %v1472, %v1485
      %v1509 = vmul.f32 %v1473, %v1485
      %v1510 = vmul.f32 %v1474, %v1485
      %v1511 = vmul.f32 %v1475, %v1485
      %v1512 = vmul.f32 %v1476, %v1485
      %v1513 = vmul.f32 %v1477, %v1485
      %v1514 = vmul.f32 %v1478, %v1485
      %v1515 = vmul.f32 %v1479, %v1485
      %v1516 = vmul.f32 %v1480, %v1485
      %v1517 = vmul.f32 %v1481, %v1485
      %v1518 = vadd.f32 %v1418, %v1486
      %v1519 = vadd.f32 %v1419, %v1487
      %v1520 = vadd.f32 %v1420, %v1488
      %v1521 = vadd.f32 %v1421, %v1489
      %v1522 = vadd.f32 %v1422, %v1490
      %v1523 = vadd.f32 %v1423, %v1491
      %v1524 = vadd.f32 %v1424, %v1492
      %v1525 = vadd.f32 %v1425, %v1493
      %v1526 = vadd.f32 %v1426, %v1494
      %v1527 = vadd.f32 %v1427, %v1495
      %v1528 = vadd.f32 %v1428, %v1496
      %v1529 = vadd.f32 %v1429, %v1497
      %v1530 = vadd.f32 %v1430, %v1498
      %v1531 = vadd.f32 %v1431, %v1499
      %v1532 = vadd.f32 %v1432, %v1500
      %v1533 = vadd.f32 %v1433, %v1501
      %v1534 = vadd.f32 %v1434, %v1502
      %v1535 = vadd.f32 %v1435, %v1503
      %v1536 = vadd.f32 %v1436, %v1504
      %v1537 = vadd.f32 %v1437, %v1505
      %v1538 = vadd.f32 %v1438, %v1506
      %v1539 = vadd.f32 %v1439, %v1507
      %v1540 = vadd.f32 %v1440, %v1508
      %v1541 = vadd.f32 %v1441, %v1509
      %v1542 = vadd.f32 %v1442, %v1510
      %v1543 = vadd.f32 %v1443, %v1511
      %v1544 = vadd.f32 %v1444, %v1512
      %v1545 = vadd.f32 %v1445, %v1513
      %v1546 = vadd.f32 %v1446, %v1514
      %v1547 = vadd.f32 %v1447, %v1515
      %v1548 = vadd.f32 %v1448, %v1516
      %v1549 = vadd.f32 %v1449, %v1517
      %s1550 = scalar_lea.vmem [#allocation2], 48
      %v1551 = vld [vmem:[%s1550] sm:$0xff]
      %v1552 = vld [vmem:[%s1550 + $0x8] sm:$0xff]
      %v1553 = vld [vmem:[%s1550 + $0x18] sm:$0xff]
      %v1554 = vld [vmem:[%s1550 + $0x20] sm:$0xff]
      %v1555 = vld [vmem:[%s1550 + $0x30] sm:$0xff]
      %v1556 = vld [vmem:[%s1550 + $0x38] sm:$0xff]
      %v1557 = vld [vmem:[%s1550 + $0x48] sm:$0xff]
      %v1558 = vld [vmem:[%s1550 + $0x50] sm:$0xff]
      %v1559 = vld [vmem:[%s1550 + $0x60] sm:$0xff]
      %v1560 = vld [vmem:[%s1550 + $0x68] sm:$0xff]
      %v1561 = vld [vmem:[%s1550 + $0x78] sm:$0xff]
      %v1562 = vld [vmem:[%s1550 + $0x80] sm:$0xff]
      %v1563 = vld [vmem:[%s1550 + $0x90] sm:$0xff]
      %v1564 = vld [vmem:[%s1550 + $0x98] sm:$0xff]
      %v1565 = vld [vmem:[%s1550 + $0xa8] sm:$0xff]
      %v1566 = vld [vmem:[%s1550 + $0xb0] sm:$0xff]
      %v1567 = vld [vmem:[%s1550 + $0xc0] sm:$0xff]
      %v1568 = vld [vmem:[%s1550 + $0xc8] sm:$0xff]
      %v1569 = vld [vmem:[%s1550 + $0xd8] sm:$0xff]
      %v1570 = vld [vmem:[%s1550 + $0xe0] sm:$0xff]
      %v1571 = vld [vmem:[%s1550 + $0xf0] sm:$0xff]
      %v1572 = vld [vmem:[%s1550 + $0xf8] sm:$0xff]
      %v1573 = vld [vmem:[%s1550 + $0x108] sm:$0xff]
      %v1574 = vld [vmem:[%s1550 + $0x110] sm:$0xff]
      %v1575 = vld [vmem:[%s1550 + $0x120] sm:$0xff]
      %v1576 = vld [vmem:[%s1550 + $0x128] sm:$0xff]
      %v1577 = vld [vmem:[%s1550 + $0x138] sm:$0xff]
      %v1578 = vld [vmem:[%s1550 + $0x140] sm:$0xff]
      %v1579 = vld [vmem:[%s1550 + $0x150] sm:$0xff]
      %v1580 = vld [vmem:[%s1550 + $0x158] sm:$0xff]
      %v1581 = vld [vmem:[%s1550 + $0x168] sm:$0xff]
      %v1582 = vld [vmem:[%s1550 + $0x170] sm:$0xff]
      %v1583 = vlaneseq
      %v1584 = vshrl.u32 %v1583, 7
      %v1585 = vsub.s32 6, %v1584
      %v1586 = vrot.slane %v948, %v1585
      %v1587 = vmul.f32 %v1551, %v1586
      %v1588 = vmul.f32 %v1552, %v1586
      %v1589 = vmul.f32 %v1553, %v1586
      %v1590 = vmul.f32 %v1554, %v1586
      %v1591 = vmul.f32 %v1555, %v1586
      %v1592 = vmul.f32 %v1556, %v1586
      %v1593 = vmul.f32 %v1557, %v1586
      %v1594 = vmul.f32 %v1558, %v1586
      %v1595 = vmul.f32 %v1559, %v1586
      %v1596 = vmul.f32 %v1560, %v1586
      %v1597 = vmul.f32 %v1561, %v1586
      %v1598 = vmul.f32 %v1562, %v1586
      %v1599 = vmul.f32 %v1563, %v1586
      %v1600 = vmul.f32 %v1564, %v1586
      %v1601 = vmul.f32 %v1565, %v1586
      %v1602 = vmul.f32 %v1566, %v1586
      %v1603 = vmul.f32 %v1567, %v1586
      %v1604 = vmul.f32 %v1568, %v1586
      %v1605 = vmul.f32 %v1569, %v1586
      %v1606 = vmul.f32 %v1570, %v1586
      %v1607 = vmul.f32 %v1571, %v1586
      %v1608 = vmul.f32 %v1572, %v1586
      %v1609 = vmul.f32 %v1573, %v1586
      %v1610 = vmul.f32 %v1574, %v1586
      %v1611 = vmul.f32 %v1575, %v1586
      %v1612 = vmul.f32 %v1576, %v1586
      %v1613 = vmul.f32 %v1577, %v1586
      %v1614 = vmul.f32 %v1578, %v1586
      %v1615 = vmul.f32 %v1579, %v1586
      %v1616 = vmul.f32 %v1580, %v1586
      %v1617 = vmul.f32 %v1581, %v1586
      %v1618 = vmul.f32 %v1582, %v1586
      %v1619 = vadd.f32 %v1518, %v1587
      %v1620 = vadd.f32 %v1519, %v1588
      %v1621 = vadd.f32 %v1520, %v1589
      %v1622 = vadd.f32 %v1521, %v1590
      %v1623 = vadd.f32 %v1522, %v1591
      %v1624 = vadd.f32 %v1523, %v1592
      %v1625 = vadd.f32 %v1524, %v1593
      %v1626 = vadd.f32 %v1525, %v1594
      %v1627 = vadd.f32 %v1526, %v1595
      %v1628 = vadd.f32 %v1527, %v1596
      %v1629 = vadd.f32 %v1528, %v1597
      %v1630 = vadd.f32 %v1529, %v1598
      %v1631 = vadd.f32 %v1530, %v1599
      %v1632 = vadd.f32 %v1531, %v1600
      %v1633 = vadd.f32 %v1532, %v1601
      %v1634 = vadd.f32 %v1533, %v1602
      %v1635 = vadd.f32 %v1534, %v1603
      %v1636 = vadd.f32 %v1535, %v1604
      %v1637 = vadd.f32 %v1536, %v1605
      %v1638 = vadd.f32 %v1537, %v1606
      %v1639 = vadd.f32 %v1538, %v1607
      %v1640 = vadd.f32 %v1539, %v1608
      %v1641 = vadd.f32 %v1540, %v1609
      %v1642 = vadd.f32 %v1541, %v1610
      %v1643 = vadd.f32 %v1542, %v1611
      %v1644 = vadd.f32 %v1543, %v1612
      %v1645 = vadd.f32 %v1544, %v1613
      %v1646 = vadd.f32 %v1545, %v1614
      %v1647 = vadd.f32 %v1546, %v1615
      %v1648 = vadd.f32 %v1547, %v1616
      %v1649 = vadd.f32 %v1548, %v1617
      %v1650 = vadd.f32 %v1549, %v1618
      %v1651 = vld [vmem:[%s1550 + $0x1] sm:$0xff]
      %v1652 = vld [vmem:[%s1550 + $0x9] sm:$0xff]
      %v1653 = vld [vmem:[%s1550 + $0x19] sm:$0xff]
      %v1654 = vld [vmem:[%s1550 + $0x21] sm:$0xff]
      %v1655 = vld [vmem:[%s1550 + $0x31] sm:$0xff]
      %v1656 = vld [vmem:[%s1550 + $0x39] sm:$0xff]
      %v1657 = vld [vmem:[%s1550 + $0x49] sm:$0xff]
      %v1658 = vld [vmem:[%s1550 + $0x51] sm:$0xff]
      %v1659 = vld [vmem:[%s1550 + $0x61] sm:$0xff]
      %v1660 = vld [vmem:[%s1550 + $0x69] sm:$0xff]
      %v1661 = vld [vmem:[%s1550 + $0x79] sm:$0xff]
      %v1662 = vld [vmem:[%s1550 + $0x81] sm:$0xff]
      %v1663 = vld [vmem:[%s1550 + $0x91] sm:$0xff]
      %v1664 = vld [vmem:[%s1550 + $0x99] sm:$0xff]
      %v1665 = vld [vmem:[%s1550 + $0xa9] sm:$0xff]
      %v1666 = vld [vmem:[%s1550 + $0xb1] sm:$0xff]
      %v1667 = vld [vmem:[%s1550 + $0xc1] sm:$0xff]
      %v1668 = vld [vmem:[%s1550 + $0xc9] sm:$0xff]
      %v1669 = vld [vmem:[%s1550 + $0xd9] sm:$0xff]
      %v1670 = vld [vmem:[%s1550 + $0xe1] sm:$0xff]
      %v1671 = vld [vmem:[%s1550 + $0xf1] sm:$0xff]
      %v1672 = vld [vmem:[%s1550 + $0xf9] sm:$0xff]
      %v1673 = vld [vmem:[%s1550 + $0x109] sm:$0xff]
      %v1674 = vld [vmem:[%s1550 + $0x111] sm:$0xff]
      %v1675 = vld [vmem:[%s1550 + $0x121] sm:$0xff]
      %v1676 = vld [vmem:[%s1550 + $0x129] sm:$0xff]
      %v1677 = vld [vmem:[%s1550 + $0x139] sm:$0xff]
      %v1678 = vld [vmem:[%s1550 + $0x141] sm:$0xff]
      %v1679 = vld [vmem:[%s1550 + $0x151] sm:$0xff]
      %v1680 = vld [vmem:[%s1550 + $0x159] sm:$0xff]
      %v1681 = vld [vmem:[%s1550 + $0x169] sm:$0xff]
      %v1682 = vld [vmem:[%s1550 + $0x171] sm:$0xff]
      %v1683 = vlaneseq
      %v1684 = vshrl.u32 %v1683, 7
      %v1685 = vsub.s32 7, %v1684
      %v1686 = vrot.slane %v948, %v1685
      %v1687 = vmul.f32 %v1651, %v1686
      %v1688 = vmul.f32 %v1652, %v1686
      %v1689 = vmul.f32 %v1653, %v1686
      %v1690 = vmul.f32 %v1654, %v1686
      %v1691 = vmul.f32 %v1655, %v1686
      %v1692 = vmul.f32 %v1656, %v1686
      %v1693 = vmul.f32 %v1657, %v1686
      %v1694 = vmul.f32 %v1658, %v1686
      %v1695 = vmul.f32 %v1659, %v1686
      %v1696 = vmul.f32 %v1660, %v1686
      %v1697 = vmul.f32 %v1661, %v1686
      %v1698 = vmul.f32 %v1662, %v1686
      %v1699 = vmul.f32 %v1663, %v1686
      %v1700 = vmul.f32 %v1664, %v1686
      %v1701 = vmul.f32 %v1665, %v1686
      %v1702 = vmul.f32 %v1666, %v1686
      %v1703 = vmul.f32 %v1667, %v1686
      %v1704 = vmul.f32 %v1668, %v1686
      %v1705 = vmul.f32 %v1669, %v1686
      %v1706 = vmul.f32 %v1670, %v1686
      %v1707 = vmul.f32 %v1671, %v1686
      %v1708 = vmul.f32 %v1672, %v1686
      %v1709 = vmul.f32 %v1673, %v1686
      %v1710 = vmul.f32 %v1674, %v1686
      %v1711 = vmul.f32 %v1675, %v1686
      %v1712 = vmul.f32 %v1676, %v1686
      %v1713 = vmul.f32 %v1677, %v1686
      %v1714 = vmul.f32 %v1678, %v1686
      %v1715 = vmul.f32 %v1679, %v1686
      %v1716 = vmul.f32 %v1680, %v1686
      %v1717 = vmul.f32 %v1681, %v1686
      %v1718 = vmul.f32 %v1682, %v1686
      %v1719 = vadd.f32 %v1619, %v1687
      %v1720 = vadd.f32 %v1620, %v1688
      %v1721 = vadd.f32 %v1621, %v1689
      %v1722 = vadd.f32 %v1622, %v1690
      %v1723 = vadd.f32 %v1623, %v1691
      %v1724 = vadd.f32 %v1624, %v1692
      %v1725 = vadd.f32 %v1625, %v1693
      %v1726 = vadd.f32 %v1626, %v1694
      %v1727 = vadd.f32 %v1627, %v1695
      %v1728 = vadd.f32 %v1628, %v1696
      %v1729 = vadd.f32 %v1629, %v1697
      %v1730 = vadd.f32 %v1630, %v1698
      %v1731 = vadd.f32 %v1631, %v1699
      %v1732 = vadd.f32 %v1632, %v1700
      %v1733 = vadd.f32 %v1633, %v1701
      %v1734 = vadd.f32 %v1634, %v1702
      %v1735 = vadd.f32 %v1635, %v1703
      %v1736 = vadd.f32 %v1636, %v1704
      %v1737 = vadd.f32 %v1637, %v1705
      %v1738 = vadd.f32 %v1638, %v1706
      %v1739 = vadd.f32 %v1639, %v1707
      %v1740 = vadd.f32 %v1640, %v1708
      %v1741 = vadd.f32 %v1641, %v1709
      %v1742 = vadd.f32 %v1642, %v1710
      %v1743 = vadd.f32 %v1643, %v1711
      %v1744 = vadd.f32 %v1644, %v1712
      %v1745 = vadd.f32 %v1645, %v1713
      %v1746 = vadd.f32 %v1646, %v1714
      %v1747 = vadd.f32 %v1647, %v1715
      %v1748 = vadd.f32 %v1648, %v1716
      %v1749 = vadd.f32 %v1649, %v1717
      %v1750 = vadd.f32 %v1650, %v1718
      %v1751 = vld [vmem:[%s1550 + $0x2] sm:$0xff]
      %v1752 = vld [vmem:[%s1550 + $0xa] sm:$0xff]
      %v1753 = vld [vmem:[%s1550 + $0x1a] sm:$0xff]
      %v1754 = vld [vmem:[%s1550 + $0x22] sm:$0xff]
      %v1755 = vld [vmem:[%s1550 + $0x32] sm:$0xff]
      %v1756 = vld [vmem:[%s1550 + $0x3a] sm:$0xff]
      %v1757 = vld [vmem:[%s1550 + $0x4a] sm:$0xff]
      %v1758 = vld [vmem:[%s1550 + $0x52] sm:$0xff]
      %v1759 = vld [vmem:[%s1550 + $0x62] sm:$0xff]
      %v1760 = vld [vmem:[%s1550 + $0x6a] sm:$0xff]
      %v1761 = vld [vmem:[%s1550 + $0x7a] sm:$0xff]
      %v1762 = vld [vmem:[%s1550 + $0x82] sm:$0xff]
      %v1763 = vld [vmem:[%s1550 + $0x92] sm:$0xff]
      %v1764 = vld [vmem:[%s1550 + $0x9a] sm:$0xff]
      %v1765 = vld [vmem:[%s1550 + $0xaa] sm:$0xff]
      %v1766 = vld [vmem:[%s1550 + $0xb2] sm:$0xff]
      %v1767 = vld [vmem:[%s1550 + $0xc2] sm:$0xff]
      %v1768 = vld [vmem:[%s1550 + $0xca] sm:$0xff]
      %v1769 = vld [vmem:[%s1550 + $0xda] sm:$0xff]
      %v1770 = vld [vmem:[%s1550 + $0xe2] sm:$0xff]
      %v1771 = vld [vmem:[%s1550 + $0xf2] sm:$0xff]
      %v1772 = vld [vmem:[%s1550 + $0xfa] sm:$0xff]
      %v1773 = vld [vmem:[%s1550 + $0x10a] sm:$0xff]
      %v1774 = vld [vmem:[%s1550 + $0x112] sm:$0xff]
      %v1775 = vld [vmem:[%s1550 + $0x122] sm:$0xff]
      %v1776 = vld [vmem:[%s1550 + $0x12a] sm:$0xff]
      %v1777 = vld [vmem:[%s1550 + $0x13a] sm:$0xff]
      %v1778 = vld [vmem:[%s1550 + $0x142] sm:$0xff]
      %v1779 = vld [vmem:[%s1550 + $0x152] sm:$0xff]
      %v1780 = vld [vmem:[%s1550 + $0x15a] sm:$0xff]
      %v1781 = vld [vmem:[%s1550 + $0x16a] sm:$0xff]
      %v1782 = vld [vmem:[%s1550 + $0x172] sm:$0xff]
      %v1783 = vlaneseq
      %v1784 = vshrl.u32 %v1783, 7
      %v1785 = vsub.s32 0, %v1784
      %v1786 = vrot.slane %v949, %v1785
      %v1787 = vmul.f32 %v1751, %v1786
      %v1788 = vmul.f32 %v1752, %v1786
      %v1789 = vmul.f32 %v1753, %v1786
      %v1790 = vmul.f32 %v1754, %v1786
      %v1791 = vmul.f32 %v1755, %v1786
      %v1792 = vmul.f32 %v1756, %v1786
      %v1793 = vmul.f32 %v1757, %v1786
      %v1794 = vmul.f32 %v1758, %v1786
      %v1795 = vmul.f32 %v1759, %v1786
      %v1796 = vmul.f32 %v1760, %v1786
      %v1797 = vmul.f32 %v1761, %v1786
      %v1798 = vmul.f32 %v1762, %v1786
      %v1799 = vmul.f32 %v1763, %v1786
      %v1800 = vmul.f32 %v1764, %v1786
      %v1801 = vmul.f32 %v1765, %v1786
      %v1802 = vmul.f32 %v1766, %v1786
      %v1803 = vmul.f32 %v1767, %v1786
      %v1804 = vmul.f32 %v1768, %v1786
      %v1805 = vmul.f32 %v1769, %v1786
      %v1806 = vmul.f32 %v1770, %v1786
      %v1807 = vmul.f32 %v1771, %v1786
      %v1808 = vmul.f32 %v1772, %v1786
      %v1809 = vmul.f32 %v1773, %v1786
      %v1810 = vmul.f32 %v1774, %v1786
      %v1811 = vmul.f32 %v1775, %v1786
      %v1812 = vmul.f32 %v1776, %v1786
      %v1813 = vmul.f32 %v1777, %v1786
      %v1814 = vmul.f32 %v1778, %v1786
      %v1815 = vmul.f32 %v1779, %v1786
      %v1816 = vmul.f32 %v1780, %v1786
      %v1817 = vmul.f32 %v1781, %v1786
      %v1818 = vmul.f32 %v1782, %v1786
      %v1819 = vadd.f32 %v1719, %v1787
      %v1820 = vadd.f32 %v1720, %v1788
      %v1821 = vadd.f32 %v1721, %v1789
      %v1822 = vadd.f32 %v1722, %v1790
      %v1823 = vadd.f32 %v1723, %v1791
      %v1824 = vadd.f32 %v1724, %v1792
      %v1825 = vadd.f32 %v1725, %v1793
      %v1826 = vadd.f32 %v1726, %v1794
      %v1827 = vadd.f32 %v1727, %v1795
      %v1828 = vadd.f32 %v1728, %v1796
      %v1829 = vadd.f32 %v1729, %v1797
      %v1830 = vadd.f32 %v1730, %v1798
      %v1831 = vadd.f32 %v1731, %v1799
      %v1832 = vadd.f32 %v1732, %v1800
      %v1833 = vadd.f32 %v1733, %v1801
      %v1834 = vadd.f32 %v1734, %v1802
      %v1835 = vadd.f32 %v1735, %v1803
      %v1836 = vadd.f32 %v1736, %v1804
      %v1837 = vadd.f32 %v1737, %v1805
      %v1838 = vadd.f32 %v1738, %v1806
      %v1839 = vadd.f32 %v1739, %v1807
      %v1840 = vadd.f32 %v1740, %v1808
      %v1841 = vadd.f32 %v1741, %v1809
      %v1842 = vadd.f32 %v1742, %v1810
      %v1843 = vadd.f32 %v1743, %v1811
      %v1844 = vadd.f32 %v1744, %v1812
      %v1845 = vadd.f32 %v1745, %v1813
      %v1846 = vadd.f32 %v1746, %v1814
      %v1847 = vadd.f32 %v1747, %v1815
      %v1848 = vadd.f32 %v1748, %v1816
      %v1849 = vadd.f32 %v1749, %v1817
      %v1850 = vadd.f32 %v1750, %v1818
      %v1851 = vld [vmem:[%s4] sm:$0x1]
      %v1853 = vlaneseq
      %v1854 = vshrl.u32 %v1853, 7
      %v1855 = vsub.s32 0, %v1854
      %v1856 = vrot.slane %v1851, %v1855
      %v1858 = vadd.f32 %v1819, %v1856
      %v1859 = vadd.f32 %v1820, %v1856
      %v1860 = vadd.f32 %v1821, %v1856
      %v1861 = vadd.f32 %v1822, %v1856
      %v1862 = vadd.f32 %v1823, %v1856
      %v1863 = vadd.f32 %v1824, %v1856
      %v1864 = vadd.f32 %v1825, %v1856
      %v1865 = vadd.f32 %v1826, %v1856
      %v1866 = vadd.f32 %v1827, %v1856
      %v1867 = vadd.f32 %v1828, %v1856
      %v1868 = vadd.f32 %v1829, %v1856
      %v1869 = vadd.f32 %v1830, %v1856
      %v1870 = vadd.f32 %v1831, %v1856
      %v1871 = vadd.f32 %v1832, %v1856
      %v1872 = vadd.f32 %v1833, %v1856
      %v1873 = vadd.f32 %v1834, %v1856
      %v1874 = vadd.f32 %v1835, %v1856
      %v1875 = vadd.f32 %v1836, %v1856
      %v1876 = vadd.f32 %v1837, %v1856
      %v1877 = vadd.f32 %v1838, %v1856
      %v1878 = vadd.f32 %v1839, %v1856
      %v1879 = vadd.f32 %v1840, %v1856
      %v1880 = vadd.f32 %v1841, %v1856
      %v1881 = vadd.f32 %v1842, %v1856
      %v1882 = vadd.f32 %v1843, %v1856
      %v1883 = vadd.f32 %v1844, %v1856
      %v1884 = vadd.f32 %v1845, %v1856
      %v1885 = vadd.f32 %v1846, %v1856
      %v1886 = vadd.f32 %v1847, %v1856
      %v1887 = vadd.f32 %v1848, %v1856
      %v1888 = vadd.f32 %v1849, %v1856
      %v1889 = vadd.f32 %v1850, %v1856
      %v1890 = vadd.f32 %v1858, 3.0
      %v1891 = vadd.f32 %v1859, 3.0
      %v1892 = vadd.f32 %v1860, 3.0
      %v1893 = vadd.f32 %v1861, 3.0
      %v1894 = vadd.f32 %v1862, 3.0
      %v1895 = vadd.f32 %v1863, 3.0
      %v1896 = vadd.f32 %v1864, 3.0
      %v1897 = vadd.f32 %v1865, 3.0
      %v1898 = vadd.f32 %v1866, 3.0
      %v1899 = vadd.f32 %v1867, 3.0
      %v1900 = vadd.f32 %v1868, 3.0
      %v1901 = vadd.f32 %v1869, 3.0
      %v1902 = vadd.f32 %v1870, 3.0
      %v1903 = vadd.f32 %v1871, 3.0
      %v1904 = vadd.f32 %v1872, 3.0
      %v1905 = vadd.f32 %v1873, 3.0
      %v1906 = vadd.f32 %v1874, 3.0
      %v1907 = vadd.f32 %v1875, 3.0
      %v1908 = vadd.f32 %v1876, 3.0
      %v1909 = vadd.f32 %v1877, 3.0
      %v1910 = vadd.f32 %v1878, 3.0
      %v1911 = vadd.f32 %v1879, 3.0
      %v1912 = vadd.f32 %v1880, 3.0
      %v1913 = vadd.f32 %v1881, 3.0
      %v1914 = vadd.f32 %v1882, 3.0
      %v1915 = vadd.f32 %v1883, 3.0
      %v1916 = vadd.f32 %v1884, 3.0
      %v1917 = vadd.f32 %v1885, 3.0
      %v1918 = vadd.f32 %v1886, 3.0
      %v1919 = vadd.f32 %v1887, 3.0
      %v1920 = vadd.f32 %v1888, 3.0
      %v1921 = vadd.f32 %v1889, 3.0
      %v1922 = vmax.f32 %v1890, 0.0
      %v1923 = vmax.f32 %v1891, 0.0
      %v1924 = vmax.f32 %v1892, 0.0
      %v1925 = vmax.f32 %v1893, 0.0
      %v1926 = vmax.f32 %v1894, 0.0
      %v1927 = vmax.f32 %v1895, 0.0
      %v1928 = vmax.f32 %v1896, 0.0
      %v1929 = vmax.f32 %v1897, 0.0
      %v1930 = vmax.f32 %v1898, 0.0
      %v1931 = vmax.f32 %v1899, 0.0
      %v1932 = vmax.f32 %v1900, 0.0
      %v1933 = vmax.f32 %v1901, 0.0
      %v1934 = vmax.f32 %v1902, 0.0
      %v1935 = vmax.f32 %v1903, 0.0
      %v1936 = vmax.f32 %v1904, 0.0
      %v1937 = vmax.f32 %v1905, 0.0
      %v1938 = vmax.f32 %v1906, 0.0
      %v1939 = vmax.f32 %v1907, 0.0
      %v1940 = vmax.f32 %v1908, 0.0
      %v1941 = vmax.f32 %v1909, 0.0
      %v1942 = vmax.f32 %v1910, 0.0
      %v1943 = vmax.f32 %v1911, 0.0
      %v1944 = vmax.f32 %v1912, 0.0
      %v1945 = vmax.f32 %v1913, 0.0
      %v1946 = vmax.f32 %v1914, 0.0
      %v1947 = vmax.f32 %v1915, 0.0
      %v1948 = vmax.f32 %v1916, 0.0
      %v1949 = vmax.f32 %v1917, 0.0
      %v1950 = vmax.f32 %v1918, 0.0
      %v1951 = vmax.f32 %v1919, 0.0
      %v1952 = vmax.f32 %v1920, 0.0
      %v1953 = vmax.f32 %v1921, 0.0
      %v1954 = vmin.f32 %v1922, 6.0
      %v1955 = vmin.f32 %v1923, 6.0
      %v1956 = vmin.f32 %v1924, 6.0
      %v1957 = vmin.f32 %v1925, 6.0
      %v1958 = vmin.f32 %v1926, 6.0
      %v1959 = vmin.f32 %v1927, 6.0
      %v1960 = vmin.f32 %v1928, 6.0
      %v1961 = vmin.f32 %v1929, 6.0
      %v1962 = vmin.f32 %v1930, 6.0
      %v1963 = vmin.f32 %v1931, 6.0
      %v1964 = vmin.f32 %v1932, 6.0
      %v1965 = vmin.f32 %v1933, 6.0
      %v1966 = vmin.f32 %v1934, 6.0
      %v1967 = vmin.f32 %v1935, 6.0
      %v1968 = vmin.f32 %v1936, 6.0
      %v1969 = vmin.f32 %v1937, 6.0
      %v1970 = vmin.f32 %v1938, 6.0
      %v1971 = vmin.f32 %v1939, 6.0
      %v1972 = vmin.f32 %v1940, 6.0
      %v1973 = vmin.f32 %v1941, 6.0
      %v1974 = vmin.f32 %v1942, 6.0
      %v1975 = vmin.f32 %v1943, 6.0
      %v1976 = vmin.f32 %v1944, 6.0
      %v1977 = vmin.f32 %v1945, 6.0
      %v1978 = vmin.f32 %v1946, 6.0
      %v1979 = vmin.f32 %v1947, 6.0
      %v1980 = vmin.f32 %v1948, 6.0
      %v1981 = vmin.f32 %v1949, 6.0
      %v1982 = vmin.f32 %v1950, 6.0
      %v1983 = vmin.f32 %v1951, 6.0
      %v1984 = vmin.f32 %v1952, 6.0
      %v1985 = vmin.f32 %v1953, 6.0
      %v1986 = vmul.f32 %v1858, %v1954
      %v1987 = vmul.f32 %v1859, %v1955
      %v1988 = vmul.f32 %v1860, %v1956
      %v1989 = vmul.f32 %v1861, %v1957
      %v1990 = vmul.f32 %v1862, %v1958
      %v1991 = vmul.f32 %v1863, %v1959
      %v1992 = vmul.f32 %v1864, %v1960
      %v1993 = vmul.f32 %v1865, %v1961
      %v1994 = vmul.f32 %v1866, %v1962
      %v1995 = vmul.f32 %v1867, %v1963
      %v1996 = vmul.f32 %v1868, %v1964
      %v1997 = vmul.f32 %v1869, %v1965
      %v1998 = vmul.f32 %v1870, %v1966
      %v1999 = vmul.f32 %v1871, %v1967
      %v2000 = vmul.f32 %v1872, %v1968
      %v2001 = vmul.f32 %v1873, %v1969
      %v2002 = vmul.f32 %v1874, %v1970
      %v2003 = vmul.f32 %v1875, %v1971
      %v2004 = vmul.f32 %v1876, %v1972
      %v2005 = vmul.f32 %v1877, %v1973
      %v2006 = vmul.f32 %v1878, %v1974
      %v2007 = vmul.f32 %v1879, %v1975
      %v2008 = vmul.f32 %v1880, %v1976
      %v2009 = vmul.f32 %v1881, %v1977
      %v2010 = vmul.f32 %v1882, %v1978
      %v2011 = vmul.f32 %v1883, %v1979
      %v2012 = vmul.f32 %v1884, %v1980
      %v2013 = vmul.f32 %v1885, %v1981
      %v2014 = vmul.f32 %v1886, %v1982
      %v2015 = vmul.f32 %v1887, %v1983
      %v2016 = vmul.f32 %v1888, %v1984
      %v2017 = vmul.f32 %v1889, %v1985
      %v2018 = vmul.f32 %v1986, 0.16666667
      %v2019 = vmul.f32 %v1987, 0.16666667
      %v2020 = vmul.f32 %v1988, 0.16666667
      %v2021 = vmul.f32 %v1989, 0.16666667
      %v2022 = vmul.f32 %v1990, 0.16666667
      %v2023 = vmul.f32 %v1991, 0.16666667
      %v2024 = vmul.f32 %v1992, 0.16666667
      %v2025 = vmul.f32 %v1993, 0.16666667
      %v2026 = vmul.f32 %v1994, 0.16666667
      %v2027 = vmul.f32 %v1995, 0.16666667
      %v2028 = vmul.f32 %v1996, 0.16666667
      %v2029 = vmul.f32 %v1997, 0.16666667
      %v2030 = vmul.f32 %v1998, 0.16666667
      %v2031 = vmul.f32 %v1999, 0.16666667
      %v2032 = vmul.f32 %v2000, 0.16666667
      %v2033 = vmul.f32 %v2001, 0.16666667
      %v2034 = vmul.f32 %v2002, 0.16666667
      %v2035 = vmul.f32 %v2003, 0.16666667
      %v2036 = vmul.f32 %v2004, 0.16666667
      %v2037 = vmul.f32 %v2005, 0.16666667
      %v2038 = vmul.f32 %v2006, 0.16666667
      %v2039 = vmul.f32 %v2007, 0.16666667
      %v2040 = vmul.f32 %v2008, 0.16666667
      %v2041 = vmul.f32 %v2009, 0.16666667
      %v2042 = vmul.f32 %v2010, 0.16666667
      %v2043 = vmul.f32 %v2011, 0.16666667
      %v2044 = vmul.f32 %v2012, 0.16666667
      %v2045 = vmul.f32 %v2013, 0.16666667
      %v2046 = vmul.f32 %v2014, 0.16666667
      %v2047 = vmul.f32 %v2015, 0.16666667
      %v2048 = vmul.f32 %v2016, 0.16666667
      %v2049 = vmul.f32 %v2017, 0.16666667
      %v2050 = vld [vmem:[%s5] sm:$0xff]
      %v2051 = vld [vmem:[%s5 + $0x8] sm:$0xff]
      %v2052 = vld [vmem:[%s6] sm:$0x1]
      %v2054 = vlaneseq
      %v2055 = vshrl.u32 %v2054, 7
      %v2056 = vsub.s32 0, %v2055
      %v2057 = vrot.slane %v2052, %v2056
      %v2060 = vsel %vm859, %v2018, 0
      %v2063 = vsel %vm859, %v2019, 0
      %v2066 = vsel %vm859, %v2020, 0
      %v2069 = vsel %vm859, %v2021, 0
      %v2072 = vsel %vm859, %v2022, 0
      %v2075 = vsel %vm859, %v2023, 0
      %v2078 = vsel %vm859, %v2024, 0
      %v2081 = vsel %vm859, %v2025, 0
      %v2084 = vsel %vm859, %v2026, 0
      %v2087 = vsel %vm859, %v2027, 0
      %v2090 = vsel %vm859, %v2028, 0
      %v2093 = vsel %vm859, %v2029, 0
      %v2096 = vsel %vm859, %v2030, 0
      %v2099 = vsel %vm859, %v2031, 0
      %v2102 = vsel %vm859, %v2032, 0
      %v2105 = vsel %vm859, %v2033, 0
      %v2108 = vsel %vm859, %v2034, 0
      %v2111 = vsel %vm859, %v2035, 0
      %v2114 = vsel %vm859, %v2036, 0
      %v2117 = vsel %vm859, %v2037, 0
      %v2120 = vsel %vm859, %v2038, 0
      %v2123 = vsel %vm859, %v2039, 0
      %v2126 = vsel %vm859, %v2040, 0
      %v2129 = vsel %vm859, %v2041, 0
      %v2132 = vsel %vm859, %v2042, 0
      %v2135 = vsel %vm859, %v2043, 0
      %v2138 = vsel %vm859, %v2044, 0
      %v2141 = vsel %vm859, %v2045, 0
      %v2144 = vsel %vm859, %v2046, 0
      %v2147 = vsel %vm859, %v2047, 0
      %v2150 = vsel %vm859, %v2048, 0
      %v2153 = vsel %vm859, %v2049, 0
      %2155 = vmatprep.subr.mxu0 0.0
      %2156 = vmatpush1.msra.mxu0 %v2050
      %2157 = vmatprep.subr.mxu0 0.0
      %2158 = vmatpush1.msra.mxu0 %v2051
      %2159 = vmatprep.subr.mxu0 0.0
      %2160 = vmatpush1.msra.mxu0 0.0
      %2161 = vmatprep.subr.mxu0 0.0
      %2162 = vmatpush1.msra.mxu0 0.0
      %2163 = vmatprep.subr.mxu0 0.0
      %2164 = vmatpush1.msra.mxu0 0.0
      %2165 = vmatprep.subr.mxu0 0.0
      %2166 = vmatpush1.msra.mxu0 0.0
      %2167 = vmatprep.subr.mxu0 0.0
      %2168 = vmatpush1.msra.mxu0 0.0
      %2169 = vmatprep.subr.mxu0 0.0
      %2170 = vmatpush1.msra.mxu0 0.0
      %2171 = vmatprep.subr.mxu0 0.0
      %2172 = vmatpush1.msra.mxu0 0.0
      %2173 = vmatprep.subr.mxu0 0.0
      %2174 = vmatpush1.msra.mxu0 0.0
      %2175 = vmatprep.subr.mxu0 0.0
      %2176 = vmatpush1.msra.mxu0 0.0
      %2177 = vmatprep.subr.mxu0 0.0
      %2178 = vmatpush1.msra.mxu0 0.0
      %2179 = vmatprep.subr.mxu0 0.0
      %2180 = vmatpush1.msra.mxu0 0.0
      %2181 = vmatprep.subr.mxu0 0.0
      %2182 = vmatpush1.msra.mxu0 0.0
      %2183 = vmatprep.subr.mxu0 0.0
      %2184 = vmatpush1.msra.mxu0 0.0
      %2185 = vmatprep.subr.mxu0 0.0
      %2186 = vmatpush1.msra.mxu0 0.0
      %2187 = vmatprep.subr.mxu0 0.0
      %2188 = vmatpush1.msra.mxu0 0.0
      %2189 = vmatprep.subr.mxu0 0.0
      %2190 = vmatpush1.msra.mxu0 0.0
      %2191 = vmatprep.subr.mxu0 0.0
      %2192 = vmatpush1.msra.mxu0 0.0
      %2193 = vmatprep.subr.mxu0 0.0
      %2194 = vmatpush1.msra.mxu0 0.0
      %2195 = vmatprep.subr.mxu0 0.0
      %2196 = vmatpush1.msra.mxu0 0.0
      %2197 = vmatprep.subr.mxu0 0.0
      %2198 = vmatpush1.msra.mxu0 0.0
      %2199 = vmatprep.subr.mxu0 0.0
      %2200 = vmatpush1.msra.mxu0 0.0
      %2201 = vmatprep.subr.mxu0 0.0
      %2202 = vmatpush1.msra.mxu0 0.0
      %2203 = vmatprep.subr.mxu0 0.0
      %2204 = vmatpush1.msra.mxu0 0.0
      %2205 = vmatprep.subr.mxu0 0.0
      %2206 = vmatpush1.msra.mxu0 0.0
      %2207 = vmatprep.subr.mxu0 0.0
      %2208 = vmatpush1.msra.mxu0 0.0
      %2209 = vmatprep.subr.mxu0 0.0
      %2210 = vmatpush1.msra.mxu0 0.0
      %2211 = vmatprep.subr.mxu0 0.0
      %2212 = vmatpush1.msra.mxu0 0.0
      %2213 = vmatprep.subr.mxu0 0.0
      %2214 = vmatpush1.msra.mxu0 0.0
      %2215 = vmatprep.subr.mxu0 0.0
      %2216 = vmatpush1.msra.mxu0 0.0
      %2217 = vmatprep.subr.mxu0 0.0
      %2218 = vmatpush1.msra.mxu0 0.0
      %2219 = vmatprep.mubr.f32.mxu0 0.0
      %2220 = vmatmul.mubr.f32.gmra.mrb[0].mxu0 %v2060
      %v2221 = vpop.f32.mrb[0].mxu0
      %v2222 = vadd.f32 %v2057, %v2221
      %v2223 = vpop.f32.mrb[0].mxu0
      %2224 = vmatprep.mubr.f32.mxu0 0.0
      %2225 = vmatmul.mubr.f32.gmra.mrb[0].mxu0 %v2063
      %v2226 = vpop.f32.mrb[0].mxu0
      %v2227 = vadd.f32 %v2057, %v2226
      %v2228 = vpop.f32.mrb[0].mxu0
      %2229 = vmatprep.mubr.f32.mxu0 0.0
      %2230 = vmatmul.mubr.f32.gmra.mrb[0].mxu0 %v2066
      %v2231 = vpop.f32.mrb[0].mxu0
      %v2232 = vadd.f32 %v2057, %v2231
      %v2233 = vpop.f32.mrb[0].mxu0
      %2234 = vmatprep.mubr.f32.mxu0 0.0
      %2235 = vmatmul.mubr.f32.gmra.mrb[0].mxu0 %v2069
      %v2236 = vpop.f32.mrb[0].mxu0
      %v2237 = vadd.f32 %v2057, %v2236
      %v2238 = vpop.f32.mrb[0].mxu0
      %2239 = vmatprep.mubr.f32.mxu0 0.0
      %2240 = vmatmul.mubr.f32.gmra.mrb[0].mxu0 %v2072
      %v2241 = vpop.f32.mrb[0].mxu0
      %v2242 = vadd.f32 %v2057, %v2241
      %v2243 = vpop.f32.mrb[0].mxu0
      %2244 = vmatprep.mubr.f32.mxu0 0.0
      %2245 = vmatmul.mubr.f32.gmra.mrb[0].mxu0 %v2075
      %v2246 = vpop.f32.mrb[0].mxu0
      %v2247 = vadd.f32 %v2057, %v2246
      %v2248 = vpop.f32.mrb[0].mxu0
      %2249 = vmatprep.mubr.f32.mxu0 0.0
      %2250 = vmatmul.mubr.f32.gmra.mrb[0].mxu0 %v2078
      %v2251 = vpop.f32.mrb[0].mxu0
      %v2252 = vadd.f32 %v2057, %v2251
      %v2253 = vpop.f32.mrb[0].mxu0
      %2254 = vmatprep.mubr.f32.mxu0 0.0
      %2255 = vmatmul.mubr.f32.gmra.mrb[0].mxu0 %v2081
      %v2256 = vpop.f32.mrb[0].mxu0
      %v2257 = vadd.f32 %v2057, %v2256
      %v2258 = vpop.f32.mrb[0].mxu0
      %2259 = vmatprep.mubr.f32.mxu0 0.0
      %2260 = vmatmul.mubr.f32.gmra.mrb[0].mxu0 %v2084
      %v2261 = vpop.f32.mrb[0].mxu0
      %v2262 = vadd.f32 %v2057, %v2261
      %v2263 = vpop.f32.mrb[0].mxu0
      %2264 = vmatprep.mubr.f32.mxu0 0.0
      %2265 = vmatmul.mubr.f32.gmra.mrb[0].mxu0 %v2087
      %v2266 = vpop.f32.mrb[0].mxu0
      %v2267 = vadd.f32 %v2057, %v2266
      %v2268 = vpop.f32.mrb[0].mxu0
      %2269 = vmatprep.mubr.f32.mxu0 0.0
      %2270 = vmatmul.mubr.f32.gmra.mrb[0].mxu0 %v2090
      %v2271 = vpop.f32.mrb[0].mxu0
      %v2272 = vadd.f32 %v2057, %v2271
      %v2273 = vpop.f32.mrb[0].mxu0
      %2274 = vmatprep.mubr.f32.mxu0 0.0
      %2275 = vmatmul.mubr.f32.gmra.mrb[0].mxu0 %v2093
      %v2276 = vpop.f32.mrb[0].mxu0
      %v2277 = vadd.f32 %v2057, %v2276
      %v2278 = vpop.f32.mrb[0].mxu0
      %2279 = vmatprep.mubr.f32.mxu0 0.0
      %2280 = vmatmul.mubr.f32.gmra.mrb[0].mxu0 %v2096
      %v2281 = vpop.f32.mrb[0].mxu0
      %v2282 = vadd.f32 %v2057, %v2281
      %v2283 = vpop.f32.mrb[0].mxu0
      %2284 = vmatprep.mubr.f32.mxu0 0.0
      %2285 = vmatmul.mubr.f32.gmra.mrb[0].mxu0 %v2099
      %v2286 = vpop.f32.mrb[0].mxu0
      %v2287 = vadd.f32 %v2057, %v2286
      %v2288 = vpop.f32.mrb[0].mxu0
      %2289 = vmatprep.mubr.f32.mxu0 0.0
      %2290 = vmatmul.mubr.f32.gmra.mrb[0].mxu0 %v2102
      %v2291 = vpop.f32.mrb[0].mxu0
      %v2292 = vadd.f32 %v2057, %v2291
      %v2293 = vpop.f32.mrb[0].mxu0
      %2294 = vmatprep.mubr.f32.mxu0 0.0
      %2295 = vmatmul.mubr.f32.gmra.mrb[0].mxu0 %v2105
      %v2296 = vpop.f32.mrb[0].mxu0
      %v2297 = vadd.f32 %v2057, %v2296
      %v2298 = vpop.f32.mrb[0].mxu0
      %2299 = vmatprep.mubr.f32.mxu0 0.0
      %2300 = vmatmul.mubr.f32.gmra.mrb[0].mxu0 %v2108
      %v2301 = vpop.f32.mrb[0].mxu0
      %v2302 = vadd.f32 %v2057, %v2301
      %v2303 = vpop.f32.mrb[0].mxu0
      %2304 = vmatprep.mubr.f32.mxu0 0.0
      %2305 = vmatmul.mubr.f32.gmra.mrb[0].mxu0 %v2111
      %v2306 = vpop.f32.mrb[0].mxu0
      %v2307 = vadd.f32 %v2057, %v2306
      %v2308 = vpop.f32.mrb[0].mxu0
      %2309 = vmatprep.mubr.f32.mxu0 0.0
      %2310 = vmatmul.mubr.f32.gmra.mrb[0].mxu0 %v2114
      %v2311 = vpop.f32.mrb[0].mxu0
      %v2312 = vadd.f32 %v2057, %v2311
      %v2313 = vpop.f32.mrb[0].mxu0
      %2314 = vmatprep.mubr.f32.mxu0 0.0
      %2315 = vmatmul.mubr.f32.gmra.mrb[0].mxu0 %v2117
      %v2316 = vpop.f32.mrb[0].mxu0
      %v2317 = vadd.f32 %v2057, %v2316
      %v2318 = vpop.f32.mrb[0].mxu0
      %2319 = vmatprep.mubr.f32.mxu0 0.0
      %2320 = vmatmul.mubr.f32.gmra.mrb[0].mxu0 %v2120
      %v2321 = vpop.f32.mrb[0].mxu0
      %v2322 = vadd.f32 %v2057, %v2321
      %v2323 = vpop.f32.mrb[0].mxu0
      %2324 = vmatprep.mubr.f32.mxu0 0.0
      %2325 = vmatmul.mubr.f32.gmra.mrb[0].mxu0 %v2123
      %v2326 = vpop.f32.mrb[0].mxu0
      %v2327 = vadd.f32 %v2057, %v2326
      %v2328 = vpop.f32.mrb[0].mxu0
      %2329 = vmatprep.mubr.f32.mxu0 0.0
      %2330 = vmatmul.mubr.f32.gmra.mrb[0].mxu0 %v2126
      %v2331 = vpop.f32.mrb[0].mxu0
      %v2332 = vadd.f32 %v2057, %v2331
      %v2333 = vpop.f32.mrb[0].mxu0
      %2334 = vmatprep.mubr.f32.mxu0 0.0
      %2335 = vmatmul.mubr.f32.gmra.mrb[0].mxu0 %v2129
      %v2336 = vpop.f32.mrb[0].mxu0
      %v2337 = vadd.f32 %v2057, %v2336
      %v2338 = vpop.f32.mrb[0].mxu0
      %2339 = vmatprep.mubr.f32.mxu0 0.0
      %2340 = vmatmul.mubr.f32.gmra.mrb[0].mxu0 %v2132
      %v2341 = vpop.f32.mrb[0].mxu0
      %v2342 = vadd.f32 %v2057, %v2341
      %v2343 = vpop.f32.mrb[0].mxu0
      %2344 = vmatprep.mubr.f32.mxu0 0.0
      %2345 = vmatmul.mubr.f32.gmra.mrb[0].mxu0 %v2135
      %v2346 = vpop.f32.mrb[0].mxu0
      %v2347 = vadd.f32 %v2057, %v2346
      %v2348 = vpop.f32.mrb[0].mxu0
      %2349 = vmatprep.mubr.f32.mxu0 0.0
      %2350 = vmatmul.mubr.f32.gmra.mrb[0].mxu0 %v2138
      %v2351 = vpop.f32.mrb[0].mxu0
      %v2352 = vadd.f32 %v2057, %v2351
      %v2353 = vpop.f32.mrb[0].mxu0
      %2354 = vmatprep.mubr.f32.mxu0 0.0
      %2355 = vmatmul.mubr.f32.gmra.mrb[0].mxu0 %v2141
      %v2356 = vpop.f32.mrb[0].mxu0
      %v2357 = vadd.f32 %v2057, %v2356
      %v2358 = vpop.f32.mrb[0].mxu0
      %2359 = vmatprep.mubr.f32.mxu0 0.0
      %2360 = vmatmul.mubr.f32.gmra.mrb[0].mxu0 %v2144
      %v2361 = vpop.f32.mrb[0].mxu0
      %v2362 = vadd.f32 %v2057, %v2361
      %v2363 = vpop.f32.mrb[0].mxu0
      %2364 = vmatprep.mubr.f32.mxu0 0.0
      %2365 = vmatmul.mubr.f32.gmra.mrb[0].mxu0 %v2147
      %v2366 = vpop.f32.mrb[0].mxu0
      %v2367 = vadd.f32 %v2057, %v2366
      %v2368 = vpop.f32.mrb[0].mxu0
      %2369 = vmatprep.mubr.f32.mxu0 0.0
      %2370 = vmatmul.mubr.f32.gmra.mrb[0].mxu0 %v2150
      %v2371 = vpop.f32.mrb[0].mxu0
      %v2372 = vadd.f32 %v2057, %v2371
      %v2373 = vpop.f32.mrb[0].mxu0
      %2374 = vmatprep.mubr.f32.mxu0 0.0
      %2375 = vmatmul.mubr.f32.gmra.mrb[0].mxu0 %v2153
      %v2376 = vpop.f32.mrb[0].mxu0
      %v2377 = vadd.f32 %v2057, %v2376
      %v2378 = vpop.f32.mrb[0].mxu0
      %2379 = vdwg.mxu0
      %v2380 = vld [vmem:[%s7] sm:$0xf]
      %v2381 = vld [vmem:[%s8] sm:$0x1]
      %v2383 = vlaneseq
      %v2384 = vshrl.u32 %v2383, 7
      %v2385 = vsub.s32 0, %v2384
      %v2386 = vrot.slane %v2381, %v2385
      %v2389 = vsel %vm470, %v2380, 0
      %2391 = vmatprep.subr.mxu0 0.0
      %2392 = vmatpush1.msra.mxu0 %v2389
      %2393 = vmatprep.subr.mxu0 0.0
      %2394 = vmatpush1.msra.mxu0 0.0
      %2395 = vmatprep.subr.mxu0 0.0
      %2396 = vmatpush1.msra.mxu0 0.0
      %2397 = vmatprep.subr.mxu0 0.0
      %2398 = vmatpush1.msra.mxu0 0.0
      %2399 = vmatprep.subr.mxu0 0.0
      %2400 = vmatpush1.msra.mxu0 0.0
      %2401 = vmatprep.subr.mxu0 0.0
      %2402 = vmatpush1.msra.mxu0 0.0
      %2403 = vmatprep.subr.mxu0 0.0
      %2404 = vmatpush1.msra.mxu0 0.0
      %2405 = vmatprep.subr.mxu0 0.0
      %2406 = vmatpush1.msra.mxu0 0.0
      %2407 = vmatprep.subr.mxu0 0.0
      %2408 = vmatpush1.msra.mxu0 0.0
      %2409 = vmatprep.subr.mxu0 0.0
      %2410 = vmatpush1.msra.mxu0 0.0
      %2411 = vmatprep.subr.mxu0 0.0
      %2412 = vmatpush1.msra.mxu0 0.0
      %2413 = vmatprep.subr.mxu0 0.0
      %2414 = vmatpush1.msra.mxu0 0.0
      %2415 = vmatprep.subr.mxu0 0.0
      %2416 = vmatpush1.msra.mxu0 0.0
      %2417 = vmatprep.subr.mxu0 0.0
      %2418 = vmatpush1.msra.mxu0 0.0
      %2419 = vmatprep.subr.mxu0 0.0
      %2420 = vmatpush1.msra.mxu0 0.0
      %2421 = vmatprep.subr.mxu0 0.0
      %2422 = vmatpush1.msra.mxu0 0.0
      %2423 = vmatprep.subr.mxu0 0.0
      %2424 = vmatpush1.msra.mxu0 0.0
      %2425 = vmatprep.subr.mxu0 0.0
      %2426 = vmatpush1.msra.mxu0 0.0
      %2427 = vmatprep.subr.mxu0 0.0
      %2428 = vmatpush1.msra.mxu0 0.0
      %2429 = vmatprep.subr.mxu0 0.0
      %2430 = vmatpush1.msra.mxu0 0.0
      %2431 = vmatprep.subr.mxu0 0.0
      %2432 = vmatpush1.msra.mxu0 0.0
      %2433 = vmatprep.subr.mxu0 0.0
      %2434 = vmatpush1.msra.mxu0 0.0
      %2435 = vmatprep.subr.mxu0 0.0
      %2436 = vmatpush1.msra.mxu0 0.0
      %2437 = vmatprep.subr.mxu0 0.0
      %2438 = vmatpush1.msra.mxu0 0.0
      %2439 = vmatprep.subr.mxu0 0.0
      %2440 = vmatpush1.msra.mxu0 0.0
      %2441 = vmatprep.subr.mxu0 0.0
      %2442 = vmatpush1.msra.mxu0 0.0
      %2443 = vmatprep.subr.mxu0 0.0
      %2444 = vmatpush1.msra.mxu0 0.0
      %2445 = vmatprep.subr.mxu0 0.0
      %2446 = vmatpush1.msra.mxu0 0.0
      %2447 = vmatprep.subr.mxu0 0.0
      %2448 = vmatpush1.msra.mxu0 0.0
      %2449 = vmatprep.subr.mxu0 0.0
      %2450 = vmatpush1.msra.mxu0 0.0
      %2451 = vmatprep.subr.mxu0 0.0
      %2452 = vmatpush1.msra.mxu0 0.0
      %2453 = vmatprep.subr.mxu0 0.0
      %2454 = vmatpush1.msra.mxu0 0.0
      %2455 = vmatprep.mubr.f32.mxu0 0.0
      %2456 = vmatmul.mubr.f32.gmra.mrb[0].mxu0 %v375
      %v2457 = vpop.f32.mrb[0].mxu0
      %v2458 = vadd.f32 %v2386, %v2457
      %v2459 = vpop.f32.mrb[0].mxu0
      %2460 = vmatprep.mubr.f32.mxu0 0.0
      %2461 = vmatmul.mubr.f32.gmra.mrb[0].mxu0 %v378
      %v2462 = vpop.f32.mrb[0].mxu0
      %v2463 = vadd.f32 %v2386, %v2462
      %v2464 = vpop.f32.mrb[0].mxu0
      %2465 = vmatprep.mubr.f32.mxu0 0.0
      %2466 = vmatmul.mubr.f32.gmra.mrb[0].mxu0 %v381
      %v2467 = vpop.f32.mrb[0].mxu0
      %v2468 = vadd.f32 %v2386, %v2467
      %v2469 = vpop.f32.mrb[0].mxu0
      %2470 = vmatprep.mubr.f32.mxu0 0.0
      %2471 = vmatmul.mubr.f32.gmra.mrb[0].mxu0 %v384
      %v2472 = vpop.f32.mrb[0].mxu0
      %v2473 = vadd.f32 %v2386, %v2472
      %v2474 = vpop.f32.mrb[0].mxu0
      %2475 = vmatprep.mubr.f32.mxu0 0.0
      %2476 = vmatmul.mubr.f32.gmra.mrb[0].mxu0 %v387
      %v2477 = vpop.f32.mrb[0].mxu0
      %v2478 = vadd.f32 %v2386, %v2477
      %v2479 = vpop.f32.mrb[0].mxu0
      %2480 = vmatprep.mubr.f32.mxu0 0.0
      %2481 = vmatmul.mubr.f32.gmra.mrb[0].mxu0 %v390
      %v2482 = vpop.f32.mrb[0].mxu0
      %v2483 = vadd.f32 %v2386, %v2482
      %v2484 = vpop.f32.mrb[0].mxu0
      %2485 = vmatprep.mubr.f32.mxu0 0.0
      %2486 = vmatmul.mubr.f32.gmra.mrb[0].mxu0 %v393
      %v2487 = vpop.f32.mrb[0].mxu0
      %v2488 = vadd.f32 %v2386, %v2487
      %v2489 = vpop.f32.mrb[0].mxu0
      %2490 = vmatprep.mubr.f32.mxu0 0.0
      %2491 = vmatmul.mubr.f32.gmra.mrb[0].mxu0 %v396
      %v2492 = vpop.f32.mrb[0].mxu0
      %v2493 = vadd.f32 %v2386, %v2492
      %v2494 = vpop.f32.mrb[0].mxu0
      %2495 = vmatprep.mubr.f32.mxu0 0.0
      %2496 = vmatmul.mubr.f32.gmra.mrb[0].mxu0 %v399
      %v2497 = vpop.f32.mrb[0].mxu0
      %v2498 = vadd.f32 %v2386, %v2497
      %v2499 = vpop.f32.mrb[0].mxu0
      %2500 = vmatprep.mubr.f32.mxu0 0.0
      %2501 = vmatmul.mubr.f32.gmra.mrb[0].mxu0 %v402
      %v2502 = vpop.f32.mrb[0].mxu0
      %v2503 = vadd.f32 %v2386, %v2502
      %v2504 = vpop.f32.mrb[0].mxu0
      %2505 = vmatprep.mubr.f32.mxu0 0.0
      %2506 = vmatmul.mubr.f32.gmra.mrb[0].mxu0 %v405
      %v2507 = vpop.f32.mrb[0].mxu0
      %v2508 = vadd.f32 %v2386, %v2507
      %v2509 = vpop.f32.mrb[0].mxu0
      %2510 = vmatprep.mubr.f32.mxu0 0.0
      %2511 = vmatmul.mubr.f32.gmra.mrb[0].mxu0 %v408
      %v2512 = vpop.f32.mrb[0].mxu0
      %v2513 = vadd.f32 %v2386, %v2512
      %v2514 = vpop.f32.mrb[0].mxu0
      %2515 = vmatprep.mubr.f32.mxu0 0.0
      %2516 = vmatmul.mubr.f32.gmra.mrb[0].mxu0 %v411
      %v2517 = vpop.f32.mrb[0].mxu0
      %v2518 = vadd.f32 %v2386, %v2517
      %v2519 = vpop.f32.mrb[0].mxu0
      %2520 = vmatprep.mubr.f32.mxu0 0.0
      %2521 = vmatmul.mubr.f32.gmra.mrb[0].mxu0 %v414
      %v2522 = vpop.f32.mrb[0].mxu0
      %v2523 = vadd.f32 %v2386, %v2522
      %v2524 = vpop.f32.mrb[0].mxu0
      %2525 = vmatprep.mubr.f32.mxu0 0.0
      %2526 = vmatmul.mubr.f32.gmra.mrb[0].mxu0 %v417
      %v2527 = vpop.f32.mrb[0].mxu0
      %v2528 = vadd.f32 %v2386, %v2527
      %v2529 = vpop.f32.mrb[0].mxu0
      %2530 = vmatprep.mubr.f32.mxu0 0.0
      %2531 = vmatmul.mubr.f32.gmra.mrb[0].mxu0 %v420
      %v2532 = vpop.f32.mrb[0].mxu0
      %v2533 = vadd.f32 %v2386, %v2532
      %v2534 = vpop.f32.mrb[0].mxu0
      %2535 = vmatprep.mubr.f32.mxu0 0.0
      %2536 = vmatmul.mubr.f32.gmra.mrb[0].mxu0 %v423
      %v2537 = vpop.f32.mrb[0].mxu0
      %v2538 = vadd.f32 %v2386, %v2537
      %v2539 = vpop.f32.mrb[0].mxu0
      %2540 = vmatprep.mubr.f32.mxu0 0.0
      %2541 = vmatmul.mubr.f32.gmra.mrb[0].mxu0 %v426
      %v2542 = vpop.f32.mrb[0].mxu0
      %v2543 = vadd.f32 %v2386, %v2542
      %v2544 = vpop.f32.mrb[0].mxu0
      %2545 = vmatprep.mubr.f32.mxu0 0.0
      %2546 = vmatmul.mubr.f32.gmra.mrb[0].mxu0 %v429
      %v2547 = vpop.f32.mrb[0].mxu0
      %v2548 = vadd.f32 %v2386, %v2547
      %v2549 = vpop.f32.mrb[0].mxu0
      %2550 = vmatprep.mubr.f32.mxu0 0.0
      %2551 = vmatmul.mubr.f32.gmra.mrb[0].mxu0 %v432
      %v2552 = vpop.f32.mrb[0].mxu0
      %v2553 = vadd.f32 %v2386, %v2552
      %v2554 = vpop.f32.mrb[0].mxu0
      %2555 = vmatprep.mubr.f32.mxu0 0.0
      %2556 = vmatmul.mubr.f32.gmra.mrb[0].mxu0 %v435
      %v2557 = vpop.f32.mrb[0].mxu0
      %v2558 = vadd.f32 %v2386, %v2557
      %v2559 = vpop.f32.mrb[0].mxu0
      %2560 = vmatprep.mubr.f32.mxu0 0.0
      %2561 = vmatmul.mubr.f32.gmra.mrb[0].mxu0 %v438
      %v2562 = vpop.f32.mrb[0].mxu0
      %v2563 = vadd.f32 %v2386, %v2562
      %v2564 = vpop.f32.mrb[0].mxu0
      %2565 = vmatprep.mubr.f32.mxu0 0.0
      %2566 = vmatmul.mubr.f32.gmra.mrb[0].mxu0 %v441
      %v2567 = vpop.f32.mrb[0].mxu0
      %v2568 = vadd.f32 %v2386, %v2567
      %v2569 = vpop.f32.mrb[0].mxu0
      %2570 = vmatprep.mubr.f32.mxu0 0.0
      %2571 = vmatmul.mubr.f32.gmra.mrb[0].mxu0 %v444
      %v2572 = vpop.f32.mrb[0].mxu0
      %v2573 = vadd.f32 %v2386, %v2572
      %v2574 = vpop.f32.mrb[0].mxu0
      %2575 = vmatprep.mubr.f32.mxu0 0.0
      %2576 = vmatmul.mubr.f32.gmra.mrb[0].mxu0 %v447
      %v2577 = vpop.f32.mrb[0].mxu0
      %v2578 = vadd.f32 %v2386, %v2577
      %v2579 = vpop.f32.mrb[0].mxu0
      %2580 = vmatprep.mubr.f32.mxu0 0.0
      %2581 = vmatmul.mubr.f32.gmra.mrb[0].mxu0 %v450
      %v2582 = vpop.f32.mrb[0].mxu0
      %v2583 = vadd.f32 %v2386, %v2582
      %v2584 = vpop.f32.mrb[0].mxu0
      %2585 = vmatprep.mubr.f32.mxu0 0.0
      %2586 = vmatmul.mubr.f32.gmra.mrb[0].mxu0 %v453
      %v2587 = vpop.f32.mrb[0].mxu0
      %v2588 = vadd.f32 %v2386, %v2587
      %v2589 = vpop.f32.mrb[0].mxu0
      %2590 = vmatprep.mubr.f32.mxu0 0.0
      %2591 = vmatmul.mubr.f32.gmra.mrb[0].mxu0 %v456
      %v2592 = vpop.f32.mrb[0].mxu0
      %v2593 = vadd.f32 %v2386, %v2592
      %v2594 = vpop.f32.mrb[0].mxu0
      %2595 = vmatprep.mubr.f32.mxu0 0.0
      %2596 = vmatmul.mubr.f32.gmra.mrb[0].mxu0 %v459
      %v2597 = vpop.f32.mrb[0].mxu0
      %v2598 = vadd.f32 %v2386, %v2597
      %v2599 = vpop.f32.mrb[0].mxu0
      %2600 = vmatprep.mubr.f32.mxu0 0.0
      %2601 = vmatmul.mubr.f32.gmra.mrb[0].mxu0 %v462
      %v2602 = vpop.f32.mrb[0].mxu0
      %v2603 = vadd.f32 %v2386, %v2602
      %v2604 = vpop.f32.mrb[0].mxu0
      %2605 = vmatprep.mubr.f32.mxu0 0.0
      %2606 = vmatmul.mubr.f32.gmra.mrb[0].mxu0 %v465
      %v2607 = vpop.f32.mrb[0].mxu0
      %v2608 = vadd.f32 %v2386, %v2607
      %v2609 = vpop.f32.mrb[0].mxu0
      %2610 = vmatprep.mubr.f32.mxu0 0.0
      %2611 = vmatmul.mubr.f32.gmra.mrb[0].mxu0 %v468
      %v2612 = vpop.f32.mrb[0].mxu0
      %v2613 = vadd.f32 %v2386, %v2612
      %v2614 = vpop.f32.mrb[0].mxu0
      %2615 = vdwg.mxu0
      %v2616 = vadd.f32 %v2222, %v2458
      %v2617 = vadd.f32 %v2227, %v2463
      %v2618 = vadd.f32 %v2232, %v2468
      %v2619 = vadd.f32 %v2237, %v2473
      %v2620 = vadd.f32 %v2242, %v2478
      %v2621 = vadd.f32 %v2247, %v2483
      %v2622 = vadd.f32 %v2252, %v2488
      %v2623 = vadd.f32 %v2257, %v2493
      %v2624 = vadd.f32 %v2262, %v2498
      %v2625 = vadd.f32 %v2267, %v2503
      %v2626 = vadd.f32 %v2272, %v2508
      %v2627 = vadd.f32 %v2277, %v2513
      %v2628 = vadd.f32 %v2282, %v2518
      %v2629 = vadd.f32 %v2287, %v2523
      %v2630 = vadd.f32 %v2292, %v2528
      %v2631 = vadd.f32 %v2297, %v2533
      %v2632 = vadd.f32 %v2302, %v2538
      %v2633 = vadd.f32 %v2307, %v2543
      %v2634 = vadd.f32 %v2312, %v2548
      %v2635 = vadd.f32 %v2317, %v2553
      %v2636 = vadd.f32 %v2322, %v2558
      %v2637 = vadd.f32 %v2327, %v2563
      %v2638 = vadd.f32 %v2332, %v2568
      %v2639 = vadd.f32 %v2337, %v2573
      %v2640 = vadd.f32 %v2342, %v2578
      %v2641 = vadd.f32 %v2347, %v2583
      %v2642 = vadd.f32 %v2352, %v2588
      %v2643 = vadd.f32 %v2357, %v2593
      %v2644 = vadd.f32 %v2362, %v2598
      %v2645 = vadd.f32 %v2367, %v2603
      %v2646 = vadd.f32 %v2372, %v2608
      %v2647 = vadd.f32 %v2377, %v2613
      %vm2648 = vcmask 64512
      %2649 = vst.msk [vmem:[%s332] sm:$0xff] %vm2648, %v2616
      %2650 = vst.msk [vmem:[%s332 + $0x8] sm:$0xff] %vm2648, %v2617
      %2651 = vst.msk [vmem:[%s332 + $0x10] sm:$0xff] %vm2648, %v2618
      %2652 = vst.msk [vmem:[%s332 + $0x18] sm:$0xff] %vm2648, %v2619
      %2653 = vst.msk [vmem:[%s332 + $0x20] sm:$0xff] %vm2648, %v2620
      %2654 = vst.msk [vmem:[%s332 + $0x28] sm:$0xff] %vm2648, %v2621
      %2655 = vst.msk [vmem:[%s332 + $0x30] sm:$0xff] %vm2648, %v2622
      %2656 = vst.msk [vmem:[%s332 + $0x38] sm:$0xff] %vm2648, %v2623
      %2657 = vst.msk [vmem:[%s332 + $0x40] sm:$0xff] %vm2648, %v2624
      %2658 = vst.msk [vmem:[%s332 + $0x48] sm:$0xff] %vm2648, %v2625
      %2659 = vst.msk [vmem:[%s332 + $0x50] sm:$0xff] %vm2648, %v2626
      %2660 = vst.msk [vmem:[%s332 + $0x58] sm:$0xff] %vm2648, %v2627
      %2661 = vst.msk [vmem:[%s332 + $0x60] sm:$0xff] %vm2648, %v2628
      %2662 = vst.msk [vmem:[%s332 + $0x68] sm:$0xff] %vm2648, %v2629
      %2663 = vst.msk [vmem:[%s332 + $0x70] sm:$0xff] %vm2648, %v2630
      %2664 = vst.msk [vmem:[%s332 + $0x78] sm:$0xff] %vm2648, %v2631
      %2665 = vst.msk [vmem:[%s332 + $0x80] sm:$0xff] %vm2648, %v2632
      %2666 = vst.msk [vmem:[%s332 + $0x88] sm:$0xff] %vm2648, %v2633
      %2667 = vst.msk [vmem:[%s332 + $0x90] sm:$0xff] %vm2648, %v2634
      %2668 = vst.msk [vmem:[%s332 + $0x98] sm:$0xff] %vm2648, %v2635
      %2669 = vst.msk [vmem:[%s332 + $0xa0] sm:$0xff] %vm2648, %v2636
      %2670 = vst.msk [vmem:[%s332 + $0xa8] sm:$0xff] %vm2648, %v2637
      %2671 = vst.msk [vmem:[%s332 + $0xb0] sm:$0xff] %vm2648, %v2638
      %2672 = vst.msk [vmem:[%s332 + $0xb8] sm:$0xff] %vm2648, %v2639
      %2673 = vst.msk [vmem:[%s332 + $0xc0] sm:$0xff] %vm2648, %v2640
      %2674 = vst.msk [vmem:[%s332 + $0xc8] sm:$0xff] %vm2648, %v2641
      %2675 = vst.msk [vmem:[%s332 + $0xd0] sm:$0xff] %vm2648, %v2642
      %2676 = vst.msk [vmem:[%s332 + $0xd8] sm:$0xff] %vm2648, %v2643
      %2677 = vst.msk [vmem:[%s332 + $0xe0] sm:$0xff] %vm2648, %v2644
      %2678 = vst.msk [vmem:[%s332 + $0xe8] sm:$0xff] %vm2648, %v2645
      %2679 = vst.msk [vmem:[%s332 + $0xf0] sm:$0xff] %vm2648, %v2646
      %2680 = vst.msk [vmem:[%s332 + $0xf8] sm:$0xff] %vm2648, %v2647
      %p2681 = scmp.lt.s32.totalorder %s20, 1
      %s2682 = scalar_select %p2681, %s20, 1
      %s2683 = smul.addr %s2682, 32
      %s2684 = smul.addr %s2683, 8
      %s2685 = scalar_lea.vmem %s9, %s2684
      // Predicated region
      $region57: #{tpu_custom_call.1} parent=55 // pred_check
        %p2686 = pneg %p232
      $region58: #{tpu_custom_call.1} parent=55 // pred_check_branch
        %2688 = sbr.rel (%p2686) target = $region60
      $region59: #{tpu_custom_call.1} parent=55 // pred_region
        _
      $region60: #{tpu_custom_call.1} parent=55 // pred_fallthru
        _
    $region56: #{tpu_custom_call.1} parent=5 // pred_fallthru
      _
    %p2689 = scmp.le.s32.totalorder 2, %s15
    // Predicated region
    $region61: #{tpu_custom_call.1} parent=5 // pred_check
      %p2690 = pneg %p2689
    $region62: #{tpu_custom_call.1} parent=5 // pred_check_branch
      %2692 = sbr.rel (%p2690) target = $region64
    $region63: #{tpu_custom_call.1} parent=5 // pred_region
      %s2693 = ssub.s32 %s15, 2
      // Predicated region
      $region65: #{tpu_custom_call.1} parent=63 // pred_check
        %p2694 = pneg %p238
      $region66: #{tpu_custom_call.1} parent=63 // pred_check_branch
        %2696 = sbr.rel (%p2694) target = $region68
      $region67: #{tpu_custom_call.1} parent=63 // pred_region
        %p2697 = scmp.lt.s32.totalorder %s21, 1
        %s2698 = scalar_select %p2697, %s21, 1
        %s2699 = smul.addr %s2698, 32
        %s2700 = smul.addr %s2699, 8
        %s2701 = scalar_lea.vmem %s9, %s2700
      $region68: #{tpu_custom_call.1} parent=63 // pred_fallthru
        _
    $region64: #{tpu_custom_call.1} parent=5 // pred_fallthru
      _
  $region6: #{tpu_custom_call.1} parent=0 // loop_footer
    %s19 = sadd.s32 1, %s15
  $region7: #{tpu_custom_call.1} parent=0 // loop_footer_branch
    %14 = sbr.rel target = $region3
  $region8: #{tpu_custom_call.1} parent=0 // loop_exit
    _

</llo_original>
